<compile_context>
chip_gen: v6e
topology: v6e:2x2x1
jax: 0.10.0
libtpu: 0.0.40
codegen_flags: <defaults>
</compile_context>

<pallas_src>
import numpy as np
import jax
import jax.numpy as jnp
from jax.experimental import pallas as pl
from jax.experimental.pallas import tpu as pltpu

C = 128                    # feature channels
CUP = 8 * 8 * 9            # 576 upmask channels
ETA_PAD = 128              # eta head output padded to one 128-lane tile

_VMEM_LIMIT = 48 * 1024 * 1024   # explicit budget: safely below v7x's 64 MiB physical


def _pick_block(n, per_item_bytes, vmem_budget=20 * 1024 * 1024, max_items=8):
    """Largest divisor of n that (a) fits a rough per-step VMEM budget,
    (b) is <= max_items, and (c) leaves >= 2 grid steps when possible so the
    leading 'parallel' axis can shard across v7x's two TensorCores."""
    cap = max(1, min(max_items, int(vmem_budget // max(per_item_bytes, 1))))
    if n >= 2:
        cap = min(cap, max(1, n // 2))
    cap = min(cap, n)
    for d in range(cap, 0, -1):
        if n % d == 0:
            return d
    return 1


def _pick_feature_chunk(f, cap=512 * 128):
    """Chunk of the flattened H*W*C axis for the scatter matmul (multiple of 128)."""
    if f <= cap:
        return f
    c = (cap // 128) * 128
    while c >= 128:
        if f % c == 0:
            return c
        c -= 128
    return f


# ---------------------------------------------------------------------------
# Kernel 1: 3x3 conv (padding=1) + bias + ReLU, NB images per grid step.
# Halo built in VMEM scratch, im2col -> single (M, 9C) x (9C, C) MXU matmul.
# ---------------------------------------------------------------------------
def _conv3x3_relu_kernel(x_ref, w_ref, b_ref, o_ref, pad_ref):
    # x_ref: (NB, H, W, C) bf16 ; w_ref: (9C, C) bf16 ; b_ref: (1, C) f32
    # o_ref: (NB, H, W, C) bf16 ; pad_ref: (NB, H+2, W+2, C) bf16 scratch
    NB, H, W, Cin = x_ref.shape
    Cout = o_ref.shape[-1]

    pad_ref[...] = jnp.zeros_like(pad_ref)
    pad_ref[:, 1:H + 1, 1:W + 1, :] = x_ref[...]
    xp = pad_ref[...]

    taps = [xp[:, dy:dy + H, dx:dx + W, :] for dy in range(3) for dx in range(3)]
    patches = jnp.concatenate(taps, axis=-1).reshape(NB * H * W, 9 * Cin)
    acc = jnp.dot(patches, w_ref[...], preferred_element_type=jnp.float32)
    acc = jnp.maximum(acc + b_ref[...], 0.0)
    o_ref[...] = acc.reshape(NB, H, W, Cout).astype(o_ref.dtype)


def conv3x3_relu(x, w9, b):
    # x: (N, H, W, C) bf16 ; w9: (9C, C) bf16 ; b: (1, C) f32
    N, H, W, Cin = x.shape
    Cout = w9.shape[-1]
    per_img = (H * W) * (9 * Cin * 2 + Cout * 6) + (H + 2) * (W + 2) * Cin * 4
    NB = _pick_block(N, per_img)
    return pl.pallas_call(
        _conv3x3_relu_kernel,
        out_shape=jax.ShapeDtypeStruct((N, H, W, Cout), jnp.bfloat16),
        grid=(N // NB,),
        in_specs=[
            pl.BlockSpec((NB, H, W, Cin), lambda i: (i, 0, 0, 0)),
            pl.BlockSpec((9 * Cin, Cout), lambda i: (0, 0)),
            pl.BlockSpec((1, Cout), lambda i: (0, 0)),
        ],
        out_specs=pl.BlockSpec((NB, H, W, Cout), lambda i: (i, 0, 0, 0)),
        scratch_shapes=[pltpu.VMEM((NB, H + 2, W + 2, Cin), jnp.bfloat16)],
        compiler_params=pltpu.CompilerParams(
            dimension_semantics=("parallel",),
            vmem_limit_bytes=_VMEM_LIMIT),
    )(x, w9, b)


# ---------------------------------------------------------------------------
# Kernel 2: scatter_mean as a single MXU matmul.
#   out[b, g, :] = (1/count[g]) * sum_j onehot[g, j] * x[b, j, :]
# ---------------------------------------------------------------------------
def _scatter_mean_kernel(a_ref, c_ref, x_ref, o_ref):
    # a_ref: (G, num) bf16 one-hot ; c_ref: (G, 1) f32 = 1/count
    # x_ref: (1, num, FC) bf16 ; o_ref: (1, G, FC) bf16
    acc = jnp.dot(a_ref[...], x_ref[0], preferred_element_type=jnp.float32)
    o_ref[0] = (acc * c_ref[...]).astype(o_ref.dtype)


def scatter_mean(x, a01, invc):
    # x: (B, num, F) bf16 ; a01: (G, num) bf16 ; invc: (G, 1) f32
    B, num, F = x.shape
    G = a01.shape[0]
    FC = _pick_feature_chunk(F)
    return pl.pallas_call(
        _scatter_mean_kernel,
        out_shape=jax.ShapeDtypeStruct((B, G, F), jnp.bfloat16),
        grid=(B, F // FC),
        in_specs=[
            pl.BlockSpec((G, num), lambda b, f: (0, 0)),
            pl.BlockSpec((G, 1), lambda b, f: (0, 0)),
            pl.BlockSpec((1, num, FC), lambda b, f: (b, 0, f)),
        ],
        out_specs=pl.BlockSpec((1, G, FC), lambda b, f: (b, 0, f)),
        compiler_params=pltpu.CompilerParams(
            dimension_semantics=("parallel", "parallel"),
            vmem_limit_bytes=_VMEM_LIMIT),
    )(a01, invc, x)


# ---------------------------------------------------------------------------
# Kernel 3: fused conv2(3x3)+ReLU  ->  eta head (3x3) + upmask head (1x1).
# upmask uses the conv2 activation directly (K=128); eta reuses the halo
# scratch (border stays zero).  Outputs are emitted in final channels-first
# layout: eta (GB, 1, H*W), upmask (GB, 576, H*W).
# ---------------------------------------------------------------------------
def _conv2_heads_kernel(y_ref, w2_ref, b2_ref, we_ref, be_ref, wu_ref, bu_ref,
                        eta_ref, up_ref, pad_ref):
    # y_ref : (GB, H, W, C) bf16      -- scatter-mean group features
    # w2_ref: (9C, C) bf16 ; b2_ref: (1, C) f32
    # we_ref: (9C, 128) bf16 (col 0 = eta 3x3 weight) ; be_ref: (1, 128) f32
    # wu_ref: (C, 576) bf16 ; bu_ref: (1, 576) f32
    # eta_ref: (GB, 1, H*W) f32 ; up_ref: (GB, 576, H*W) f32
    # pad_ref: (GB, H+2, W+2, C) bf16 scratch (reused for both halos)
    GB, H, W, Cin = y_ref.shape
    HW = H * W

    # ---- conv2 + ReLU (im2col, single long-K matmul) ----
    pad_ref[...] = jnp.zeros_like(pad_ref)
    pad_ref[:, 1:H + 1, 1:W + 1, :] = y_ref[...]
    yp = pad_ref[...]
    taps = [yp[:, dy:dy + H, dx:dx + W, :] for dy in range(3) for dx in range(3)]
    patches = jnp.concatenate(taps, axis=-1).reshape(GB * HW, 9 * Cin)
    z = jnp.dot(patches, w2_ref[...], preferred_element_type=jnp.float32)
    z = jnp.maximum(z + b2_ref[...], 0.0)                        # (GB*HW, C) f32
    z_bf = z.astype(jnp.bfloat16)

    # ---- upmask head: 1x1 conv == plain (M, C) x (C, 576) matmul ----
    up = jnp.dot(z_bf, wu_ref[...], preferred_element_type=jnp.float32)
    up = up + bu_ref[...]                                        # (GB*HW, 576)

    # ---- eta head: 3x3 conv; reuse halo scratch (border is still zero) ----
    pad_ref[:, 1:H + 1, 1:W + 1, :] = z_bf.reshape(GB, H, W, Cin)
    zp = pad_ref[...]
    taps2 = [zp[:, dy:dy + H, dx:dx + W, :] for dy in range(3) for dx in range(3)]
    patches2 = jnp.concatenate(taps2, axis=-1).reshape(GB * HW, 9 * Cin)
    e_all = jnp.dot(patches2, we_ref[...], preferred_element_type=jnp.float32)
    e_all = e_all + be_ref[...]                                  # (GB*HW, 128), col 0 valid

    # ---- emit final channels-first layout ----
    for i in range(GB):
        up_ref[i] = up[i * HW:(i + 1) * HW, :].T                 # (576, HW)
        e_t = e_all[i * HW:(i + 1) * HW, :].T                    # (128, HW)
        e = e_t[0:1, :]                                          # (1, HW) eta pre-act
        softplus = jnp.maximum(e, 0.0) + jnp.log1p(jnp.exp(-jnp.abs(e)))
        eta_ref[i] = 0.01 * softplus                             # GradientClip = id fwd


def conv2_and_heads(y, w2_9, b2, we128, be128, wu, bu):
    # y: (N2, H, W, C) bf16
    N2, H, W, Cin = y.shape
    HW = H * W
    per_grp = HW * (2 * 9 * Cin * 2 + Cin * 6 + 3 * CUP * 4 + 2 * ETA_PAD * 4) \
        + (H + 2) * (W + 2) * Cin * 2
    GB = _pick_block(N2, per_grp)
    return pl.pallas_call(
        _conv2_heads_kernel,
        out_shape=(jax.ShapeDtypeStruct((N2, 1, HW), jnp.float32),
                   jax.ShapeDtypeStruct((N2, CUP, HW), jnp.float32)),
        grid=(N2 // GB,),
        in_specs=[
            pl.BlockSpec((GB, H, W, Cin), lambda i: (i, 0, 0, 0)),
            pl.BlockSpec((9 * Cin, Cin), lambda i: (0, 0)),
            pl.BlockSpec((1, Cin), lambda i: (0, 0)),
            pl.BlockSpec((9 * Cin, ETA_PAD), lambda i: (0, 0)),
            pl.BlockSpec((1, ETA_PAD), lambda i: (0, 0)),
            pl.BlockSpec((Cin, CUP), lambda i: (0, 0)),
            pl.BlockSpec((1, CUP), lambda i: (0, 0)),
        ],
        out_specs=(pl.BlockSpec((GB, 1, HW), lambda i: (i, 0, 0)),
                   pl.BlockSpec((GB, CUP, HW), lambda i: (i, 0, 0))),
        scratch_shapes=[pltpu.VMEM((GB, H + 2, W + 2, Cin), jnp.bfloat16)],
        compiler_params=pltpu.CompilerParams(
            dimension_semantics=("parallel",),
            vmem_limit_bytes=_VMEM_LIMIT),
    )(y, w2_9, b2, we128, be128, wu, bu)


# ---------------------------------------------------------------------------
# GraphAgg forward
# ---------------------------------------------------------------------------
def graph_agg_forward(params, net, ii):
    # net: (batch, num, 128, ht, wd) f32 (PyTorch layout); ii: host int array.
    batch, num, ch, ht, wd = net.shape
    assert ch == C

    # torch.unique(ii, return_inverse=True): the number of groups G determines
    # the OUTPUT shapes, so this bookkeeping stays on host (same data-dependent
    # shape constraint as the PyTorch module).
    # TODO(synk): a fully jittable variant would need a static upper bound on G.
    ii_np = np.asarray(ii)
    _, ix_np = np.unique(ii_np, return_inverse=True)
    G = int(ix_np.max()) + 1
    ix = jnp.asarray(ix_np, jnp.int32)

    # group-averaging operands (exact 0/1 one-hot in bf16, exact f32 1/count)
    onehot = (ix[None, :] == jnp.arange(G, dtype=jnp.int32)[:, None])
    a01 = onehot.astype(jnp.bfloat16)
    invc = 1.0 / jnp.sum(onehot.astype(jnp.float32), axis=1, keepdims=True)

    # weights in matmul-ready layout (kh, kw, Cin, Cout) -> (9*Cin, Cout), bf16
    w1_9 = params["w1"].reshape(9 * C, C).astype(jnp.bfloat16)
    w2_9 = params["w2"].reshape(9 * C, C).astype(jnp.bfloat16)
    b1 = params["b1"].astype(jnp.float32)
    b2 = params["b2"].astype(jnp.float32)

    # eta head weight padded to a 128-lane tile (only column 0 is used)
    we128 = jnp.zeros((9 * C, ETA_PAD), jnp.float32)
    we128 = we128.at[:, 0:1].set(params["we"].reshape(9 * C, 1)).astype(jnp.bfloat16)
    be128 = jnp.zeros((1, ETA_PAD), jnp.float32)
    be128 = be128.at[:, 0:1].set(params["be"].reshape(1, 1))
    wu = params["wu"].astype(jnp.bfloat16)                    # (C, 576)
    bu = params["bu"].reshape(1, CUP).astype(jnp.float32)

    # conv1 + relu  (NCHW -> NHWC, bf16 matmul operands)
    x = net.astype(jnp.bfloat16).reshape(batch * num, ch, ht, wd).transpose(0, 2, 3, 1)
    x = conv3x3_relu(x, w1_9, b1)                             # (B*num, H, W, C)

    # scatter mean over edges -> unique frames (single MXU matmul)
    x = x.reshape(batch, num, ht * wd * C)
    x = scatter_mean(x, a01, invc)                            # (B, G, H*W*C)

    # fused conv2+relu + eta/upmask heads (channels-first outputs from kernel)
    y = x.reshape(batch * G, ht, wd, C)
    eta, upmask = conv2_and_heads(y, w2_9, b2, we128, be128, wu, bu)
    eta = eta.reshape(batch, G, ht, wd)                       # free contiguous reshape
    upmask = upmask.reshape(batch, G, CUP, ht, wd)            # free contiguous reshape
    return eta, upmask


# ---------------------------------------------------------------------------
# Pure-JAX f32 reference (for the self-test only)
# ---------------------------------------------------------------------------
def _reference(params, net, ii):
    batch, num, ch, ht, wd = net.shape
    ii_np = np.asarray(ii)
    _, ix = np.unique(ii_np, return_inverse=True)
    G = int(ix.max()) + 1

    def conv3(x, w, b):
        N, H, W, _ = x.shape
        xp = jnp.pad(x, ((0, 0), (1, 1), (1, 1), (0, 0)))
        out = jnp.zeros((N, H, W, w.shape[-1]), jnp.float32)
        for dy in range(3):
            for dx in range(3):
                out = out + jnp.einsum('nhwc,cd->nhwd',
                                       xp[:, dy:dy + H, dx:dx + W, :], w[dy, dx])
        return out + b.reshape(1, 1, 1, -1)

    x = net.reshape(batch * num, ch, ht, wd).transpose(0, 2, 3, 1).astype(jnp.float32)
    x = jax.nn.relu(conv3(x, params["w1"], params["b1"]))
    x = x.reshape(batch, num, ht, wd, C)
    y = jnp.zeros((batch, G, ht, wd, C), jnp.float32)
    cnt = np.zeros((G,), np.float32)
    for j in range(num):
        y = y.at[:, int(ix[j])].add(x[:, j])
        cnt[int(ix[j])] += 1.0
    y = y / jnp.asarray(cnt).reshape(1, G, 1, 1, 1)
    y = y.reshape(batch * G, ht, wd, C)
    z = jax.nn.relu(conv3(y, params["w2"], params["b2"]))
    eta = 0.01 * jax.nn.softplus(conv3(z, params["we"], params["be"]))
    up = jnp.einsum('nhwc,cd->nhwd', z, params["wu"]) + params["bu"].reshape(1, 1, 1, -1)
    eta = eta.reshape(batch, G, ht, wd)
    up = up.transpose(0, 3, 1, 2).reshape(batch, G, CUP, ht, wd)
    return eta, up


if __name__ == "__main__":
    key = jax.random.PRNGKey(0)
    k = jax.random.split(key, 9)

    # Synthetic parameters, stored in (kh, kw, Cin, Cout) / (Cin, Cout) layout.
    # (PyTorch conv weights (Cout, Cin, kh, kw) would map via transpose(2,3,1,0).)
    params = {
        "w1": jax.random.normal(k[0], (3, 3, C, C), jnp.float32) * 0.02,
        "b1": jax.random.normal(k[1], (1, C), jnp.float32) * 0.02,
        "w2": jax.random.normal(k[2], (3, 3, C, C), jnp.float32) * 0.02,
        "b2": jax.random.normal(k[3], (1, C), jnp.float32) * 0.02,
        "we": jax.random.normal(k[4], (3, 3, C, 1), jnp.float32) * 0.02,
        "be": jax.random.normal(k[5], (1, 1), jnp.float32) * 0.02,
        "wu": jax.random.normal(k[6], (C, CUP), jnp.float32) * 0.02,
        "bu": jax.random.normal(k[7], (1, CUP), jnp.float32) * 0.02,
    }

    batch, num, ht, wd = 1, 6, 8, 8
    net = jax.random.normal(k[8], (batch, num, C, ht, wd), jnp.float32)
    ii = np.array([0, 0, 1, 1, 2, 2], dtype=np.int32)   # 3 unique frames

    eta, upmask = graph_agg_forward(params, net, ii)
    jax.block_until_ready((eta, upmask))

    assert eta.shape == (batch, 3, ht, wd), eta.shape
    assert upmask.shape == (batch, 3, CUP, ht, wd), upmask.shape
    assert bool(jnp.all(jnp.isfinite(eta))) and bool(jnp.all(jnp.isfinite(upmask)))

    eta_r, up_r = _reference(params, net, ii)
    np.testing.assert_allclose(np.asarray(eta), np.asarray(eta_r), atol=1e-2, rtol=5e-2)
    np.testing.assert_allclose(np.asarray(upmask), np.asarray(up_r), atol=1e-2, rtol=5e-2)
    print("KERNEL_OK")
</pallas_src>

<mosaic_0001>
module attributes {stable_mosaic.version = 11 : i64} {
  func.func @_conv3x3_relu_kernel(%arg0: i32, %arg1: memref<3x8x8x128xbf16, #tpu.memory_space<vmem>>, %arg2: memref<1152x128xbf16, #tpu.memory_space<vmem>>, %arg3: memref<1x128xf32, #tpu.memory_space<vmem>>, %arg4: memref<3x8x8x128xbf16, #tpu.memory_space<vmem>>, %arg5: memref<3x10x10x128xbf16, #tpu.memory_space<vmem>>) attributes {dimension_semantics = [#tpu.dimension_semantics<parallel>], iteration_bounds = array<i64: 2>, scalar_prefetch = 0 : i64, scratch_operands = 1 : i64, tpu.core_type = #tpu.core_type<tc>, window_params = [{transform_indices = @transform_0, window_bounds = array<i64: 3, 8, 8, 128>}, {pipeline_mode = #tpu.pipeline_mode<synchronous>, transform_indices = @transform_1, window_bounds = array<i64: 1152, 128>}, {pipeline_mode = #tpu.pipeline_mode<synchronous>, transform_indices = @transform_2, window_bounds = array<i64: 1, 128>}, {transform_indices = @transform_3, window_bounds = array<i64: 3, 8, 8, 128>}]} {
    %cst = arith.constant 0.000000e+00 : bf16
    %0 = vector.broadcast %cst : bf16 to vector<3x10x10x128xbf16>
    %c0 = arith.constant 0 : index
    %c0_0 = arith.constant 0 : index
    %c0_1 = arith.constant 0 : index
    %c0_2 = arith.constant 0 : index
    %1 = vector.load %arg5[%c0, %c0_0, %c0_1, %c0_2] : memref<3x10x10x128xbf16, #tpu.memory_space<vmem>>, vector<3x10x10x128xbf16>
    tpu.vector_store %arg5[%c0, %c0_0, %c0_1, %c0_2], %0 {strides = array<i32>} : memref<3x10x10x128xbf16, #tpu.memory_space<vmem>>, vector<3x10x10x128xbf16>,
    %c0_3 = arith.constant 0 : index
    %c0_4 = arith.constant 0 : index
    %c0_5 = arith.constant 0 : index
    %c0_6 = arith.constant 0 : index
    %2 = vector.load %arg1[%c0_3, %c0_4, %c0_5, %c0_6] : memref<3x8x8x128xbf16, #tpu.memory_space<vmem>>, vector<3x8x8x128xbf16>
    %c0_7 = arith.constant 0 : index
    %c1 = arith.constant 1 : index
    %c1_8 = arith.constant 1 : index
    %c0_9 = arith.constant 0 : index
    %3 = vector.load %arg5[%c0_7, %c1, %c1_8, %c0_9] : memref<3x10x10x128xbf16, #tpu.memory_space<vmem>>, vector<3x8x8x128xbf16>
    tpu.vector_store %arg5[%c0_7, %c1, %c1_8, %c0_9], %2 {strides = array<i32>} : memref<3x10x10x128xbf16, #tpu.memory_space<vmem>>, vector<3x8x8x128xbf16>,
    %c0_10 = arith.constant 0 : index
    %c0_11 = arith.constant 0 : index
    %c0_12 = arith.constant 0 : index
    %c0_13 = arith.constant 0 : index
    %4 = vector.load %arg5[%c0_10, %c0_11, %c0_12, %c0_13] : memref<3x10x10x128xbf16, #tpu.memory_space<vmem>>, vector<3x10x10x128xbf16>
    %5 = vector.extract_strided_slice %4 {offsets = [0, 0, 0, 0], sizes = [3, 8, 8, 128], strides = [1, 1, 1, 1]} : vector<3x10x10x128xbf16> to vector<3x8x8x128xbf16>
    %6 = vector.extract_strided_slice %4 {offsets = [0, 0, 1, 0], sizes = [3, 8, 8, 128], strides = [1, 1, 1, 1]} : vector<3x10x10x128xbf16> to vector<3x8x8x128xbf16>
    %7 = vector.extract_strided_slice %4 {offsets = [0, 0, 2, 0], sizes = [3, 8, 8, 128], strides = [1, 1, 1, 1]} : vector<3x10x10x128xbf16> to vector<3x8x8x128xbf16>
    %8 = vector.extract_strided_slice %4 {offsets = [0, 1, 0, 0], sizes = [3, 8, 8, 128], strides = [1, 1, 1, 1]} : vector<3x10x10x128xbf16> to vector<3x8x8x128xbf16>
    %9 = vector.extract_strided_slice %4 {offsets = [0, 1, 1, 0], sizes = [3, 8, 8, 128], strides = [1, 1, 1, 1]} : vector<3x10x10x128xbf16> to vector<3x8x8x128xbf16>
    %10 = vector.extract_strided_slice %4 {offsets = [0, 1, 2, 0], sizes = [3, 8, 8, 128], strides = [1, 1, 1, 1]} : vector<3x10x10x128xbf16> to vector<3x8x8x128xbf16>
    %11 = vector.extract_strided_slice %4 {offsets = [0, 2, 0, 0], sizes = [3, 8, 8, 128], strides = [1, 1, 1, 1]} : vector<3x10x10x128xbf16> to vector<3x8x8x128xbf16>
    %12 = vector.extract_strided_slice %4 {offsets = [0, 2, 1, 0], sizes = [3, 8, 8, 128], strides = [1, 1, 1, 1]} : vector<3x10x10x128xbf16> to vector<3x8x8x128xbf16>
    %13 = vector.extract_strided_slice %4 {offsets = [0, 2, 2, 0], sizes = [3, 8, 8, 128], strides = [1, 1, 1, 1]} : vector<3x10x10x128xbf16> to vector<3x8x8x128xbf16>
    %14 = tpu.concatenate %5, %6, %7, %8, %9, %10, %11, %12, %13 in 3 : vector<3x8x8x128xbf16>, vector<3x8x8x128xbf16>, vector<3x8x8x128xbf16>, vector<3x8x8x128xbf16>, vector<3x8x8x128xbf16>, vector<3x8x8x128xbf16>, vector<3x8x8x128xbf16>, vector<3x8x8x128xbf16>, vector<3x8x8x128xbf16> -> vector<3x8x8x1152xbf16>
    %15 = vector.shape_cast %14 : vector<3x8x8x1152xbf16> to vector<192x1152xbf16>
    %c0_14 = arith.constant 0 : index
    %c0_15 = arith.constant 0 : index
    %16 = vector.load %arg2[%c0_14, %c0_15] : memref<1152x128xbf16, #tpu.memory_space<vmem>>, vector<1152x128xbf16>
    %cst_16 = arith.constant dense<0.000000e+00> : vector<192x128xf32>
    %17 = tpu.matmul %15, %16, %cst_16 {dimension_numbers = #tpu.dot_dimension_numbers<[1], [0], [0], [1], [0, 0, 1, 1], [], []>} : vector<192x1152xbf16>, vector<1152x128xbf16>, vector<192x128xf32> -> vector<192x128xf32>
    %c0_17 = arith.constant 0 : index
    %c0_18 = arith.constant 0 : index
    %18 = vector.load %arg3[%c0_17, %c0_18] : memref<1x128xf32, #tpu.memory_space<vmem>>, vector<1x128xf32>
    %19 = vector.broadcast %18 : vector<1x128xf32> to vector<192x128xf32>
    %20 = arith.addf %17, %19 : vector<192x128xf32>
    %cst_19 = arith.constant 0.000000e+00 : f32
    %21 = vector.broadcast %cst_19 : f32 to vector<192x128xf32>
    %22 = arith.maximumf %20, %21 : vector<192x128xf32>
    %23 = vector.shape_cast %22 : vector<192x128xf32> to vector<3x8x8x128xf32>
    %24 = arith.truncf %23 : vector<3x8x8x128xf32> to vector<3x8x8x128xbf16>
    %c0_20 = arith.constant 0 : index
    %c0_21 = arith.constant 0 : index
    %c0_22 = arith.constant 0 : index
    %c0_23 = arith.constant 0 : index
    %25 = vector.load %arg4[%c0_20, %c0_21, %c0_22, %c0_23] : memref<3x8x8x128xbf16, #tpu.memory_space<vmem>>, vector<3x8x8x128xbf16>
    tpu.vector_store %arg4[%c0_20, %c0_21, %c0_22, %c0_23], %24 {strides = array<i32>} : memref<3x8x8x128xbf16, #tpu.memory_space<vmem>>, vector<3x8x8x128xbf16>,
    return
  }
  func.func @transform_0(%arg0: i32) -> (i32, i32, i32, i32) {
    %c0_i32 = arith.constant 0 : i32
    %c0_i32_0 = arith.constant 0 : i32
    %c0_i32_1 = arith.constant 0 : i32
    %c0_i32_2 = arith.constant 0 : i32
    return %arg0, %c0_i32, %c0_i32_0, %c0_i32_1 : i32, i32, i32, i32
  }
  func.func @transform_1(%arg0: i32) -> (i32, i32) {
    %c0_i32 = arith.constant 0 : i32
    %c0_i32_0 = arith.constant 0 : i32
    %c0_i32_1 = arith.constant 0 : i32
    return %c0_i32, %c0_i32_0 : i32, i32
  }
  func.func @transform_2(%arg0: i32) -> (i32, i32) {
    %c0_i32 = arith.constant 0 : i32
    %c0_i32_0 = arith.constant 0 : i32
    %c0_i32_1 = arith.constant 0 : i32
    return %c0_i32, %c0_i32_0 : i32, i32
  }
  func.func @transform_3(%arg0: i32) -> (i32, i32, i32, i32) {
    %c0_i32 = arith.constant 0 : i32
    %c0_i32_0 = arith.constant 0 : i32
    %c0_i32_1 = arith.constant 0 : i32
    %c0_i32_2 = arith.constant 0 : i32
    return %arg0, %c0_i32, %c0_i32_0, %c0_i32_1 : i32, i32, i32, i32
  }
}

</mosaic_0001>

<llo_original>
// kernel: tpu_custom_call.1
$region0: #{tpu_custom_call.1}
  #allocation0 [shape = 'u32[]', space=smem, size = 0x4, offset = 0x4, fixed_abs, tag = 'smem constant byte address 0x4 - core index']
  #allocation1 [shape = 'u32[144,128]{1,0:T(1,128)}', space=vmem, size = 0x12000, scoped, tag = 'internal scratch']
  #allocation2 [shape = 'bf16[3,10,10,128]{3,2,1,0:T(8,128)(2,1)}', space=vmem, size = 0x1e000, scoped, tag = 'scratch operand']
  %s0 = inlined_call_operand.hbm [shape: bf16[6,8,8,128], index: 0, kind: input, shape index: {}]
  %s1 = inlined_call_operand.hbm [shape: bf16[1152,128], index: 1, kind: input, shape index: {}]
  %s2 = inlined_call_operand.vmem [shape: f32[1,128], index: 2, kind: input, shape index: {}]
  %s3 = inlined_call_operand.hbm [shape: bf16[6,8,8,128], index: 3, kind: output, shape index: {}]
  %s4 = sld [smem:[#allocation0]]
  $region53: #{tpu_custom_call.1} parent=0
    _
  %s6 = ssub.s32 1, %s4
  %s7 = scalar_select 0, %s6, %s4
  $region1: #{tpu_custom_call.1} parent=0
    #allocation3 [shape = 'u8[98304]{0}', space=vmem, size = 0x18000, scoped, tag = 'input window, operand 0']
    #allocation4 [shape = 's32[2]{0}', space=sflag, size = 0x8, scoped, tag = 'scoped memory for tpu_custom_call.1']
    #allocation5 [shape = 's32[2]{0}', space=sflag, size = 0x8, scoped, tag = 'scoped memory for tpu_custom_call.1']
    #allocation6 [shape = 'u8[294912]{0}', space=vmem, size = 0x48000, scoped, tag = 'input window, operand 1, single buffered']
    #allocation7 [shape = 's32[1]{0}', space=sflag, size = 0x4, scoped, tag = 'scoped memory for tpu_custom_call.1']
    #allocation8 [shape = 'u8[98304]{0}', space=vmem, size = 0x18000, scoped, tag = 'output window, operand 0']
    %8 = vsyncpa [#allocation4], 0
    %s9 = scalar_lea.sflag [#allocation4], 1
    %10 = vsyncpa %s9, 0
    %11 = vsyncpa [#allocation7], 0
    %12 = vsyncpa [#allocation5], 0
    %s13 = scalar_lea.sflag [#allocation5], 1
    %14 = vsyncpa %s13, 0
    loop: start=0, step=1, limit=4
    $region2: #{tpu_custom_call.1} parent=1 // loop_pre_header
      _
    $region3: #{tpu_custom_call.1} parent=1 // loop_header
      %s16 = sphi 0, %s20
      %p17 = scmp.ge.s32.totalorder %s16, 4
      %s26 = sphi 0, %s28
      %s29 = sphi 0, %s26
      %s30 = sphi 0, %s29
      %s46 = sphi 0, %s30
      %s50 = sphi 0, %s50
      %s52 = sphi 0, %s50
      %s53 = sphi 0, %s52
      %s67 = sphi 0, %s53
      %s71 = sphi 0, %s71
      %s73 = sphi 0, %s71
      %s74 = sphi 0, %s73
      %s88 = sphi 0, %s74
      %s94 = sphi 0, %s96
      %s97 = sphi 0, %s94
      %s98 = sphi 0, %s97
      %s114 = sphi 0, %s98
    $region4: #{tpu_custom_call.1} parent=1 // loop_header_branch
      %19 = sbr.rel (%p17) target = $region8
    $region5: #{tpu_custom_call.1} parent=1 // loop_body
      %s21 = ssub.s32 %s16, 1
      %s22 = ssub.s32 %s16, 2
      %s23 = sadd.s32 %s16, 1
      %s24 = ssub.s32 %s16, %s23
      %p25 = scmp.eq.s32.totalorder %s24, 0
      %s27 = sadd.s32 %s26, 1
      %s28 = scalar_select %p25, %s26, %s27
      %p31 = pneg %p25
      %p32 = scmp.eq.s32.totalorder %s16, 1
      %p33 = por %p31, %p32
      %p34 = scmp.ne.s32.totalorder %s26, %s29
      %p35 = scmp.eq.s32.totalorder %s16, 0
      %p36 = por %p34, %p35
      %p37 = scmp.ne.s32.totalorder %s26, %s29
      %p38 = scmp.eq.s32.totalorder %s21, 1
      %p39 = por %p37, %p38
      %p40 = scmp.ne.s32.totalorder %s29, %s30
      %p41 = scmp.eq.s32.totalorder %s21, 0
      %p42 = por %p40, %p41
      %p43 = scmp.ne.s32.totalorder %s29, %s30
      %p44 = scmp.eq.s32.totalorder %s22, 1
      %p45 = por %p43, %p44
      %p47 = scmp.ne.s32.totalorder %s30, %s46
      %p48 = scmp.eq.s32.totalorder %s22, 0
      %p49 = por %p47, %p48
      %s51 = sadd.s32 %s50, 1
      %p54 = scmp.eq.s32.totalorder %s16, 1
      %p55 = scmp.ne.s32.totalorder %s50, %s52
      %p56 = scmp.eq.s32.totalorder %s16, 0
      %p57 = por %p55, %p56
      %p58 = scmp.ne.s32.totalorder %s50, %s52
      %p59 = scmp.eq.s32.totalorder %s21, 1
      %p60 = por %p58, %p59
      %p61 = scmp.ne.s32.totalorder %s52, %s53
      %p62 = scmp.eq.s32.totalorder %s21, 0
      %p63 = por %p61, %p62
      %p64 = scmp.ne.s32.totalorder %s52, %s53
      %p65 = scmp.eq.s32.totalorder %s22, 1
      %p66 = por %p64, %p65
      %p68 = scmp.ne.s32.totalorder %s53, %s67
      %p69 = scmp.eq.s32.totalorder %s22, 0
      %p70 = por %p68, %p69
      %s72 = sadd.s32 %s71, 1
      %p75 = scmp.eq.s32.totalorder %s16, 1
      %p76 = scmp.ne.s32.totalorder %s71, %s73
      %p77 = scmp.eq.s32.totalorder %s16, 0
      %p78 = por %p76, %p77
      %p79 = scmp.ne.s32.totalorder %s71, %s73
      %p80 = scmp.eq.s32.totalorder %s21, 1
      %p81 = por %p79, %p80
      %p82 = scmp.ne.s32.totalorder %s73, %s74
      %p83 = scmp.eq.s32.totalorder %s21, 0
      %p84 = por %p82, %p83
      %p85 = scmp.ne.s32.totalorder %s73, %s74
      %p86 = scmp.eq.s32.totalorder %s22, 1
      %p87 = por %p85, %p86
      %p89 = scmp.ne.s32.totalorder %s74, %s88
      %p90 = scmp.eq.s32.totalorder %s22, 0
      %p91 = por %p89, %p90
      %s92 = ssub.s32 %s16, %s23
      %p93 = scmp.eq.s32.totalorder %s92, 0
      %s95 = sadd.s32 %s94, 1
      %s96 = scalar_select %p93, %s94, %s95
      %p99 = pneg %p93
      %p100 = scmp.eq.s32.totalorder %s16, 1
      %p101 = por %p99, %p100
      %p102 = scmp.ne.s32.totalorder %s94, %s97
      %p103 = scmp.eq.s32.totalorder %s16, 0
      %p104 = por %p102, %p103
      %p105 = scmp.ne.s32.totalorder %s94, %s97
      %p106 = scmp.eq.s32.totalorder %s21, 1
      %p107 = por %p105, %p106
      %p108 = scmp.ne.s32.totalorder %s97, %s98
      %p109 = scmp.eq.s32.totalorder %s21, 0
      %p110 = por %p108, %p109
      %p111 = scmp.ne.s32.totalorder %s97, %s98
      %p112 = scmp.eq.s32.totalorder %s22, 1
      %p113 = por %p111, %p112
      %p115 = scmp.ne.s32.totalorder %s98, %s114
      %p116 = scmp.eq.s32.totalorder %s22, 0
      %p117 = por %p115, %p116
      %p118 = scmp.le.s32.totalorder 1, %s16
      %p119 = scmp.lt.s32.totalorder %s16, 3
      %p120 = pnand %p118, %p119
      %p121 = pneg %p120
      // Predicated region
      $region9: #{tpu_custom_call.1} parent=5 // pred_check
        _
      $region10: #{tpu_custom_call.1} parent=5 // pred_check_branch
        %123 = sbr.rel (%p120) target = $region12
      $region11: #{tpu_custom_call.1} parent=5 // pred_region
        %s124 = ssub.s32 %s16, 1
        // Predicated region
        $region13: #{tpu_custom_call.1} parent=11 // pred_check
          %p125 = pneg %p63
        $region14: #{tpu_custom_call.1} parent=11 // pred_check_branch
          %127 = sbr.rel (%p125) target = $region16
        $region15: #{tpu_custom_call.1} parent=11 // pred_region
          %s129 = ssub.s32 9216, 9216
          %130 = vsyncadd [#allocation7], %s129
          %s131 = sshll.u32 [#allocation6], 4
          %s132 = int_to_ptr.vmem [resolvable:$true] %s131
          %137 = dma.hbm_to_vmem [thread:$0]  %s1, 9216, %s132, [#allocation7], 64, 64, 4
        $region16: #{tpu_custom_call.1} parent=11 // pred_fallthru
          _
        // Predicated region
        $region17: #{tpu_custom_call.1} parent=11 // pred_check
          %p138 = pneg %p84
        $region18: #{tpu_custom_call.1} parent=11 // pred_check_branch
          %140 = sbr.rel (%p138) target = $region20
        $region19: #{tpu_custom_call.1} parent=11 // pred_region
          _
        $region20: #{tpu_custom_call.1} parent=11 // pred_fallthru
          _
      $region12: #{tpu_custom_call.1} parent=5 // pred_fallthru
        _
      %p141 = scmp.lt.s32.totalorder %s16, 2
      // Predicated region
      $region21: #{tpu_custom_call.1} parent=5 // pred_check
        %p142 = pneg %p141
      $region22: #{tpu_custom_call.1} parent=5 // pred_check_branch
        %144 = sbr.rel (%p142) target = $region24
      $region23: #{tpu_custom_call.1} parent=5 // pred_region
        // Predicated region
        $region25: #{tpu_custom_call.1} parent=23 // pred_check
          %p145 = pneg %p36
        $region26: #{tpu_custom_call.1} parent=23 // pred_check_branch
          %147 = sbr.rel (%p145) target = $region28
        $region27: #{tpu_custom_call.1} parent=23 // pred_region
          %s148 = sand.u32 %s26, 1
          %s149 = scalar_lea.sflag [#allocation4], %s148
          %s150 = sand.u32 %s26, 1
          %s151 = smul.addr %s150, 96
          %s152 = scalar_lea.vmem [#allocation3], %s151
          %s153 = smul.u32 3, %s16
          %s155 = ssub.s32 1536, 1536
          %156 = vsyncadd %s149, %s155
          %s157 = smul.addr %s153, 8
          %s158 = smul.addr %s157, 64
          %s159 = scalar_lea.hbm %s0, %s158
          %s160 = sshll.u32 %s152, 4
          %s161 = int_to_ptr.vmem [resolvable:$true] %s160
          %166 = dma.hbm_to_vmem [thread:$0]  %s159, 1536, %s161, %s149, 64, 64, 4
        $region28: #{tpu_custom_call.1} parent=23 // pred_fallthru
          _
      $region24: #{tpu_custom_call.1} parent=5 // pred_fallthru
        _
      %p167 = scmp.le.s32.totalorder 1, %s16
      %p168 = scmp.lt.s32.totalorder %s16, 3
      %p169 = pnand %p167, %p168
      %p170 = pneg %p169
      // Predicated region
      $region29: #{tpu_custom_call.1} parent=5 // pred_check
        _
      $region30: #{tpu_custom_call.1} parent=5 // pred_check_branch
        %172 = sbr.rel (%p169) target = $region32
      $region31: #{tpu_custom_call.1} parent=5 // pred_region
        %s173 = ssub.s32 %s16, 1
        %s174 = sand.u32 %s29, 1
        %s175 = scalar_lea.sflag [#allocation4], %s174
        %s176 = sand.u32 %s29, 1
        %s177 = smul.addr %s176, 96
        %s178 = scalar_lea.vmem [#allocation3], %s177
        // Predicated region
        $region33: #{tpu_custom_call.1} parent=31 // pred_check
          %p179 = pneg %p42
        $region34: #{tpu_custom_call.1} parent=31 // pred_check_branch
          %181 = sbr.rel (%p179) target = $region36
        $region35: #{tpu_custom_call.1} parent=31 // pred_region
          %182 = dma.done %s175, 1536
        $region36: #{tpu_custom_call.1} parent=31 // pred_fallthru
          _
        // Predicated region
        $region37: #{tpu_custom_call.1} parent=31 // pred_check
          %p183 = pneg %p63
        $region38: #{tpu_custom_call.1} parent=31 // pred_check_branch
          %185 = sbr.rel (%p183) target = $region40
        $region39: #{tpu_custom_call.1} parent=31 // pred_region
          %186 = dma.done [#allocation7], 9216
        $region40: #{tpu_custom_call.1} parent=31 // pred_fallthru
          _
        %s187 = sand.u32 %s29, 1
        %s188 = scalar_lea.sflag [#allocation4], %s187
        %s189 = sand.u32 %s29, 1
        %s190 = smul.addr %s189, 96
        %s191 = scalar_lea.vmem [#allocation3], %s190
        %p192 = pneg %p42
        %p193 = pneg %p39
        %p194 = pneg %p63
        %p195 = pneg %p60
        %p196 = pneg %p84
        %p197 = pneg %p81
        %p198 = pneg %p110
        %p199 = pneg %p107
        %s200 = sand.u32 %s97, 1
        %s201 = scalar_lea.sflag [#allocation5], %s200
        %s202 = sand.u32 %s97, 1
        %s203 = smul.addr %s202, 96
        %s204 = scalar_lea.vmem [#allocation8], %s203
        %s205 = smul.u32 3, %s21
        %s206 = smul.u32 3, %s21
        %208 = vst [vmem:[#allocation2] sm:$0xf] 0
        %209 = vst [vmem:[#allocation2 + $0x4] sm:$0x1] 0
        %210 = vst [vmem:[#allocation2 + $0x8] sm:$0xf] 0
        %211 = vst [vmem:[#allocation2 + $0xc] sm:$0x1] 0
        %212 = vst [vmem:[#allocation2 + $0x10] sm:$0xf] 0
        %213 = vst [vmem:[#allocation2 + $0x14] sm:$0x1] 0
        %214 = vst [vmem:[#allocation2 + $0x18] sm:$0xf] 0
        %215 = vst [vmem:[#allocation2 + $0x1c] sm:$0x1] 0
        %216 = vst [vmem:[#allocation2 + $0x20] sm:$0xf] 0
        %217 = vst [vmem:[#allocation2 + $0x24] sm:$0x1] 0
        %218 = vst [vmem:[#allocation2 + $0x28] sm:$0xf] 0
        %219 = vst [vmem:[#allocation2 + $0x2c] sm:$0x1] 0
        %220 = vst [vmem:[#allocation2 + $0x30] sm:$0xf] 0
        %221 = vst [vmem:[#allocation2 + $0x34] sm:$0x1] 0
        %222 = vst [vmem:[#allocation2 + $0x38] sm:$0xf] 0
        %223 = vst [vmem:[#allocation2 + $0x3c] sm:$0x1] 0
        %224 = vst [vmem:[#allocation2 + $0x40] sm:$0xf] 0
        %225 = vst [vmem:[#allocation2 + $0x44] sm:$0x1] 0
        %226 = vst [vmem:[#allocation2 + $0x48] sm:$0xf] 0
        %227 = vst [vmem:[#allocation2 + $0x4c] sm:$0x1] 0
        %228 = vst [vmem:[#allocation2 + $0x50] sm:$0xf] 0
        %229 = vst [vmem:[#allocation2 + $0x54] sm:$0x1] 0
        %230 = vst [vmem:[#allocation2 + $0x58] sm:$0xf] 0
        %231 = vst [vmem:[#allocation2 + $0x5c] sm:$0x1] 0
        %232 = vst [vmem:[#allocation2 + $0x60] sm:$0xf] 0
        %233 = vst [vmem:[#allocation2 + $0x64] sm:$0x1] 0
        %234 = vst [vmem:[#allocation2 + $0x68] sm:$0xf] 0
        %235 = vst [vmem:[#allocation2 + $0x6c] sm:$0x1] 0
        %236 = vst [vmem:[#allocation2 + $0x70] sm:$0xf] 0
        %237 = vst [vmem:[#allocation2 + $0x74] sm:$0x1] 0
        %238 = vst [vmem:[#allocation2 + $0x78] sm:$0xf] 0
        %239 = vst [vmem:[#allocation2 + $0x7c] sm:$0x1] 0
        %240 = vst [vmem:[#allocation2 + $0x80] sm:$0xf] 0
        %241 = vst [vmem:[#allocation2 + $0x84] sm:$0x1] 0
        %242 = vst [vmem:[#allocation2 + $0x88] sm:$0xf] 0
        %243 = vst [vmem:[#allocation2 + $0x8c] sm:$0x1] 0
        %244 = vst [vmem:[#allocation2 + $0x90] sm:$0xf] 0
        %245 = vst [vmem:[#allocation2 + $0x94] sm:$0x1] 0
        %246 = vst [vmem:[#allocation2 + $0x98] sm:$0xf] 0
        %247 = vst [vmem:[#allocation2 + $0x9c] sm:$0x1] 0
        %248 = vst [vmem:[#allocation2 + $0xa0] sm:$0xf] 0
        %249 = vst [vmem:[#allocation2 + $0xa4] sm:$0x1] 0
        %250 = vst [vmem:[#allocation2 + $0xa8] sm:$0xf] 0
        %251 = vst [vmem:[#allocation2 + $0xac] sm:$0x1] 0
        %252 = vst [vmem:[#allocation2 + $0xb0] sm:$0xf] 0
        %253 = vst [vmem:[#allocation2 + $0xb4] sm:$0x1] 0
        %254 = vst [vmem:[#allocation2 + $0xb8] sm:$0xf] 0
        %255 = vst [vmem:[#allocation2 + $0xbc] sm:$0x1] 0
        %256 = vst [vmem:[#allocation2 + $0xc0] sm:$0xf] 0
        %257 = vst [vmem:[#allocation2 + $0xc4] sm:$0x1] 0
        %258 = vst [vmem:[#allocation2 + $0xc8] sm:$0xf] 0
        %259 = vst [vmem:[#allocation2 + $0xcc] sm:$0x1] 0
        %260 = vst [vmem:[#allocation2 + $0xd0] sm:$0xf] 0
        %261 = vst [vmem:[#allocation2 + $0xd4] sm:$0x1] 0
        %262 = vst [vmem:[#allocation2 + $0xd8] sm:$0xf] 0
        %263 = vst [vmem:[#allocation2 + $0xdc] sm:$0x1] 0
        %264 = vst [vmem:[#allocation2 + $0xe0] sm:$0xf] 0
        %265 = vst [vmem:[#allocation2 + $0xe4] sm:$0x1] 0
        %266 = vst [vmem:[#allocation2 + $0xe8] sm:$0xf] 0
        %267 = vst [vmem:[#allocation2 + $0xec] sm:$0x1] 0
        %v268 = vld [vmem:[%s178] sm:$0xf]
        %v269 = vld [vmem:[%s178 + $0x4] sm:$0xf]
        %v270 = vld [vmem:[%s178 + $0x8] sm:$0xf]
        %v271 = vld [vmem:[%s178 + $0xc] sm:$0xf]
        %v272 = vld [vmem:[%s178 + $0x10] sm:$0xf]
        %v273 = vld [vmem:[%s178 + $0x14] sm:$0xf]
        %v274 = vld [vmem:[%s178 + $0x18] sm:$0xf]
        %v275 = vld [vmem:[%s178 + $0x1c] sm:$0xf]
        %v276 = vld [vmem:[%s178 + $0x20] sm:$0xf]
        %v277 = vld [vmem:[%s178 + $0x24] sm:$0xf]
        %v278 = vld [vmem:[%s178 + $0x28] sm:$0xf]
        %v279 = vld [vmem:[%s178 + $0x2c] sm:$0xf]
        %v280 = vld [vmem:[%s178 + $0x30] sm:$0xf]
        %v281 = vld [vmem:[%s178 + $0x34] sm:$0xf]
        %v282 = vld [vmem:[%s178 + $0x38] sm:$0xf]
        %v283 = vld [vmem:[%s178 + $0x3c] sm:$0xf]
        %v284 = vld [vmem:[%s178 + $0x40] sm:$0xf]
        %v285 = vld [vmem:[%s178 + $0x44] sm:$0xf]
        %v286 = vld [vmem:[%s178 + $0x48] sm:$0xf]
        %v287 = vld [vmem:[%s178 + $0x4c] sm:$0xf]
        %v288 = vld [vmem:[%s178 + $0x50] sm:$0xf]
        %v289 = vld [vmem:[%s178 + $0x54] sm:$0xf]
        %v290 = vld [vmem:[%s178 + $0x58] sm:$0xf]
        %v291 = vld [vmem:[%s178 + $0x5c] sm:$0xf]
        %v293 = vshrl.u32 %v268, 16
        %v295 = vrot.slane %v293, 7
        %v296 = vshll.u32 %v268, 16
        %v298 = vor.u32 %v295, %v296
        %v299 = vrot.slane %v295, 4
        %v301 = vshrl.u32 %v269, 16
        %v303 = vrot.slane %v301, 7
        %v304 = vshll.u32 %v269, 16
        %v306 = vor.u32 %v303, %v304
        %v307 = vrot.slane %v303, 4
        %v309 = vshrl.u32 %v270, 16
        %v311 = vrot.slane %v309, 7
        %v312 = vshll.u32 %v270, 16
        %v314 = vor.u32 %v311, %v312
        %v315 = vrot.slane %v311, 4
        %v317 = vshrl.u32 %v271, 16
        %v319 = vrot.slane %v317, 7
        %v320 = vshll.u32 %v271, 16
        %v322 = vor.u32 %v319, %v320
        %v323 = vrot.slane %v319, 4
        %v325 = vshrl.u32 %v272, 16
        %v327 = vrot.slane %v325, 7
        %v328 = vshll.u32 %v272, 16
        %v330 = vor.u32 %v327, %v328
        %v331 = vrot.slane %v327, 4
        %v333 = vshrl.u32 %v273, 16
        %v335 = vrot.slane %v333, 7
        %v336 = vshll.u32 %v273, 16
        %v338 = vor.u32 %v335, %v336
        %v339 = vrot.slane %v335, 4
        %v341 = vshrl.u32 %v274, 16
        %v343 = vrot.slane %v341, 7
        %v344 = vshll.u32 %v274, 16
        %v346 = vor.u32 %v343, %v344
        %v347 = vrot.slane %v343, 4
        %v349 = vshrl.u32 %v275, 16
        %v351 = vrot.slane %v349, 7
        %v352 = vshll.u32 %v275, 16
        %v354 = vor.u32 %v351, %v352
        %v355 = vrot.slane %v351, 4
        %v357 = vshrl.u32 %v276, 16
        %v359 = vrot.slane %v357, 7
        %v360 = vshll.u32 %v276, 16
        %v362 = vor.u32 %v359, %v360
        %v363 = vrot.slane %v359, 4
        %v365 = vshrl.u32 %v277, 16
        %v367 = vrot.slane %v365, 7
        %v368 = vshll.u32 %v277, 16
        %v370 = vor.u32 %v367, %v368
        %v371 = vrot.slane %v367, 4
        %v373 = vshrl.u32 %v278, 16
        %v375 = vrot.slane %v373, 7
        %v376 = vshll.u32 %v278, 16
        %v378 = vor.u32 %v375, %v376
        %v379 = vrot.slane %v375, 4
        %v381 = vshrl.u32 %v279, 16
        %v383 = vrot.slane %v381, 7
        %v384 = vshll.u32 %v279, 16
        %v386 = vor.u32 %v383, %v384
        %v387 = vrot.slane %v383, 4
        %v389 = vshrl.u32 %v280, 16
        %v391 = vrot.slane %v389, 7
        %v392 = vshll.u32 %v280, 16
        %v394 = vor.u32 %v391, %v392
        %v395 = vrot.slane %v391, 4
        %v397 = vshrl.u32 %v281, 16
        %v399 = vrot.slane %v397, 7
        %v400 = vshll.u32 %v281, 16
        %v402 = vor.u32 %v399, %v400
        %v403 = vrot.slane %v399, 4
        %v405 = vshrl.u32 %v282, 16
        %v407 = vrot.slane %v405, 7
        %v408 = vshll.u32 %v282, 16
        %v410 = vor.u32 %v407, %v408
        %v411 = vrot.slane %v407, 4
        %v413 = vshrl.u32 %v283, 16
        %v415 = vrot.slane %v413, 7
        %v416 = vshll.u32 %v283, 16
        %v418 = vor.u32 %v415, %v416
        %v419 = vrot.slane %v415, 4
        %v421 = vshrl.u32 %v284, 16
        %v423 = vrot.slane %v421, 7
        %v424 = vshll.u32 %v284, 16
        %v426 = vor.u32 %v423, %v424
        %v427 = vrot.slane %v423, 4
        %v429 = vshrl.u32 %v285, 16
        %v431 = vrot.slane %v429, 7
        %v432 = vshll.u32 %v285, 16
        %v434 = vor.u32 %v431, %v432
        %v435 = vrot.slane %v431, 4
        %v437 = vshrl.u32 %v286, 16
        %v439 = vrot.slane %v437, 7
        %v440 = vshll.u32 %v286, 16
        %v442 = vor.u32 %v439, %v440
        %v443 = vrot.slane %v439, 4
        %v445 = vshrl.u32 %v287, 16
        %v447 = vrot.slane %v445, 7
        %v448 = vshll.u32 %v287, 16
        %v450 = vor.u32 %v447, %v448
        %v451 = vrot.slane %v447, 4
        %v453 = vshrl.u32 %v288, 16
        %v455 = vrot.slane %v453, 7
        %v456 = vshll.u32 %v288, 16
        %v458 = vor.u32 %v455, %v456
        %v459 = vrot.slane %v455, 4
        %v461 = vshrl.u32 %v289, 16
        %v463 = vrot.slane %v461, 7
        %v464 = vshll.u32 %v289, 16
        %v466 = vor.u32 %v463, %v464
        %v467 = vrot.slane %v463, 4
        %v469 = vshrl.u32 %v290, 16
        %v471 = vrot.slane %v469, 7
        %v472 = vshll.u32 %v290, 16
        %v474 = vor.u32 %v471, %v472
        %v475 = vrot.slane %v471, 4
        %v477 = vshrl.u32 %v291, 16
        %v479 = vrot.slane %v477, 7
        %v480 = vshll.u32 %v291, 16
        %v482 = vor.u32 %v479, %v480
        %v483 = vrot.slane %v479, 4
        %s532 = scalar_lea.vmem [#allocation2], 8
        %vm533 = vcmask 1043456
        %vm534 = vsmask.f32 7938
        %vm535 = vmand %vm533, %vm534
        %v536 = vld [vmem:[%s532] sm:$0xf]
        %v537 = vsel %vm535, %v298, %v536
        %538 = vst [vmem:[%s532] sm:$0xf] %v537
        %vm539 = vcmask 1040384
        %vm540 = vsmask.f32 256
        %vm541 = vmand %vm539, %vm540
        %v542 = vld [vmem:[%s532 + $0x4] sm:$0x1]
        %v543 = vsel %vm541, %v299, %v542
        %544 = vst [vmem:[%s532 + $0x4] sm:$0x1] %v543
        %v545 = vld [vmem:[%s532 + $0x8] sm:$0xf]
        %v546 = vsel %vm535, %v306, %v545
        %547 = vst [vmem:[%s532 + $0x8] sm:$0xf] %v546
        %v548 = vld [vmem:[%s532 + $0xc] sm:$0x1]
        %v549 = vsel %vm541, %v307, %v548
        %550 = vst [vmem:[%s532 + $0xc] sm:$0x1] %v549
        %v551 = vld [vmem:[%s532 + $0x10] sm:$0xf]
        %v552 = vsel %vm535, %v314, %v551
        %553 = vst [vmem:[%s532 + $0x10] sm:$0xf] %v552
        %v554 = vld [vmem:[%s532 + $0x14] sm:$0x1]
        %v555 = vsel %vm541, %v315, %v554
        %556 = vst [vmem:[%s532 + $0x14] sm:$0x1] %v555
        %v557 = vld [vmem:[%s532 + $0x18] sm:$0xf]
        %v558 = vsel %vm535, %v322, %v557
        %559 = vst [vmem:[%s532 + $0x18] sm:$0xf] %v558
        %v560 = vld [vmem:[%s532 + $0x1c] sm:$0x1]
        %v561 = vsel %vm541, %v323, %v560
        %562 = vst [vmem:[%s532 + $0x1c] sm:$0x1] %v561
        %v563 = vld [vmem:[%s532 + $0x20] sm:$0xf]
        %v564 = vsel %vm535, %v330, %v563
        %565 = vst [vmem:[%s532 + $0x20] sm:$0xf] %v564
        %v566 = vld [vmem:[%s532 + $0x24] sm:$0x1]
        %v567 = vsel %vm541, %v331, %v566
        %568 = vst [vmem:[%s532 + $0x24] sm:$0x1] %v567
        %v569 = vld [vmem:[%s532 + $0x28] sm:$0xf]
        %v570 = vsel %vm535, %v338, %v569
        %571 = vst [vmem:[%s532 + $0x28] sm:$0xf] %v570
        %v572 = vld [vmem:[%s532 + $0x2c] sm:$0x1]
        %v573 = vsel %vm541, %v339, %v572
        %574 = vst [vmem:[%s532 + $0x2c] sm:$0x1] %v573
        %v575 = vld [vmem:[%s532 + $0x30] sm:$0xf]
        %v576 = vsel %vm535, %v346, %v575
        %577 = vst [vmem:[%s532 + $0x30] sm:$0xf] %v576
        %v578 = vld [vmem:[%s532 + $0x34] sm:$0x1]
        %v579 = vsel %vm541, %v347, %v578
        %580 = vst [vmem:[%s532 + $0x34] sm:$0x1] %v579
        %v581 = vld [vmem:[%s532 + $0x38] sm:$0xf]
        %v582 = vsel %vm535, %v354, %v581
        %583 = vst [vmem:[%s532 + $0x38] sm:$0xf] %v582
        %v584 = vld [vmem:[%s532 + $0x3c] sm:$0x1]
        %v585 = vsel %vm541, %v355, %v584
        %586 = vst [vmem:[%s532 + $0x3c] sm:$0x1] %v585
        %v587 = vld [vmem:[%s532 + $0x50] sm:$0xf]
        %v588 = vsel %vm535, %v362, %v587
        %589 = vst [vmem:[%s532 + $0x50] sm:$0xf] %v588
        %v590 = vld [vmem:[%s532 + $0x54] sm:$0x1]
        %v591 = vsel %vm541, %v363, %v590
        %592 = vst [vmem:[%s532 + $0x54] sm:$0x1] %v591
        %v593 = vld [vmem:[%s532 + $0x58] sm:$0xf]
        %v594 = vsel %vm535, %v370, %v593
        %595 = vst [vmem:[%s532 + $0x58] sm:$0xf] %v594
        %v596 = vld [vmem:[%s532 + $0x5c] sm:$0x1]
        %v597 = vsel %vm541, %v371, %v596
        %598 = vst [vmem:[%s532 + $0x5c] sm:$0x1] %v597
        %v599 = vld [vmem:[%s532 + $0x60] sm:$0xf]
        %v600 = vsel %vm535, %v378, %v599
        %601 = vst [vmem:[%s532 + $0x60] sm:$0xf] %v600
        %v602 = vld [vmem:[%s532 + $0x64] sm:$0x1]
        %v603 = vsel %vm541, %v379, %v602
        %604 = vst [vmem:[%s532 + $0x64] sm:$0x1] %v603
        %v605 = vld [vmem:[%s532 + $0x68] sm:$0xf]
        %v606 = vsel %vm535, %v386, %v605
        %607 = vst [vmem:[%s532 + $0x68] sm:$0xf] %v606
        %v608 = vld [vmem:[%s532 + $0x6c] sm:$0x1]
        %v609 = vsel %vm541, %v387, %v608
        %610 = vst [vmem:[%s532 + $0x6c] sm:$0x1] %v609
        %v611 = vld [vmem:[%s532 + $0x70] sm:$0xf]
        %v612 = vsel %vm535, %v394, %v611
        %613 = vst [vmem:[%s532 + $0x70] sm:$0xf] %v612
        %v614 = vld [vmem:[%s532 + $0x74] sm:$0x1]
        %v615 = vsel %vm541, %v395, %v614
        %616 = vst [vmem:[%s532 + $0x74] sm:$0x1] %v615
        %v617 = vld [vmem:[%s532 + $0x78] sm:$0xf]
        %v618 = vsel %vm535, %v402, %v617
        %619 = vst [vmem:[%s532 + $0x78] sm:$0xf] %v618
        %v620 = vld [vmem:[%s532 + $0x7c] sm:$0x1]
        %v621 = vsel %vm541, %v403, %v620
        %622 = vst [vmem:[%s532 + $0x7c] sm:$0x1] %v621
        %v623 = vld [vmem:[%s532 + $0x80] sm:$0xf]
        %v624 = vsel %vm535, %v410, %v623
        %625 = vst [vmem:[%s532 + $0x80] sm:$0xf] %v624
        %v626 = vld [vmem:[%s532 + $0x84] sm:$0x1]
        %v627 = vsel %vm541, %v411, %v626
        %628 = vst [vmem:[%s532 + $0x84] sm:$0x1] %v627
        %v629 = vld [vmem:[%s532 + $0x88] sm:$0xf]
        %v630 = vsel %vm535, %v418, %v629
        %631 = vst [vmem:[%s532 + $0x88] sm:$0xf] %v630
        %v632 = vld [vmem:[%s532 + $0x8c] sm:$0x1]
        %v633 = vsel %vm541, %v419, %v632
        %634 = vst [vmem:[%s532 + $0x8c] sm:$0x1] %v633
        %v635 = vld [vmem:[%s532 + $0xa0] sm:$0xf]
        %v636 = vsel %vm535, %v426, %v635
        %637 = vst [vmem:[%s532 + $0xa0] sm:$0xf] %v636
        %v638 = vld [vmem:[%s532 + $0xa4] sm:$0x1]
        %v639 = vsel %vm541, %v427, %v638
        %640 = vst [vmem:[%s532 + $0xa4] sm:$0x1] %v639
        %v641 = vld [vmem:[%s532 + $0xa8] sm:$0xf]
        %v642 = vsel %vm535, %v434, %v641
        %643 = vst [vmem:[%s532 + $0xa8] sm:$0xf] %v642
        %v644 = vld [vmem:[%s532 + $0xac] sm:$0x1]
        %v645 = vsel %vm541, %v435, %v644
        %646 = vst [vmem:[%s532 + $0xac] sm:$0x1] %v645
        %v647 = vld [vmem:[%s532 + $0xb0] sm:$0xf]
        %v648 = vsel %vm535, %v442, %v647
        %649 = vst [vmem:[%s532 + $0xb0] sm:$0xf] %v648
        %v650 = vld [vmem:[%s532 + $0xb4] sm:$0x1]
        %v651 = vsel %vm541, %v443, %v650
        %652 = vst [vmem:[%s532 + $0xb4] sm:$0x1] %v651
        %v653 = vld [vmem:[%s532 + $0xb8] sm:$0xf]
        %v654 = vsel %vm535, %v450, %v653
        %655 = vst [vmem:[%s532 + $0xb8] sm:$0xf] %v654
        %v656 = vld [vmem:[%s532 + $0xbc] sm:$0x1]
        %v657 = vsel %vm541, %v451, %v656
        %658 = vst [vmem:[%s532 + $0xbc] sm:$0x1] %v657
        %v659 = vld [vmem:[%s532 + $0xc0] sm:$0xf]
        %v660 = vsel %vm535, %v458, %v659
        %661 = vst [vmem:[%s532 + $0xc0] sm:$0xf] %v660
        %v662 = vld [vmem:[%s532 + $0xc4] sm:$0x1]
        %v663 = vsel %vm541, %v459, %v662
        %664 = vst [vmem:[%s532 + $0xc4] sm:$0x1] %v663
        %v665 = vld [vmem:[%s532 + $0xc8] sm:$0xf]
        %v666 = vsel %vm535, %v466, %v665
        %667 = vst [vmem:[%s532 + $0xc8] sm:$0xf] %v666
        %v668 = vld [vmem:[%s532 + $0xcc] sm:$0x1]
        %v669 = vsel %vm541, %v467, %v668
        %670 = vst [vmem:[%s532 + $0xcc] sm:$0x1] %v669
        %v671 = vld [vmem:[%s532 + $0xd0] sm:$0xf]
        %v672 = vsel %vm535, %v474, %v671
        %673 = vst [vmem:[%s532 + $0xd0] sm:$0xf] %v672
        %v674 = vld [vmem:[%s532 + $0xd4] sm:$0x1]
        %v675 = vsel %vm541, %v475, %v674
        %676 = vst [vmem:[%s532 + $0xd4] sm:$0x1] %v675
        %v677 = vld [vmem:[%s532 + $0xd8] sm:$0xf]
        %v678 = vsel %vm535, %v482, %v677
        %679 = vst [vmem:[%s532 + $0xd8] sm:$0xf] %v678
        %v680 = vld [vmem:[%s532 + $0xdc] sm:$0x1]
        %v681 = vsel %vm541, %v483, %v680
        %682 = vst [vmem:[%s532 + $0xdc] sm:$0x1] %v681
        %v683 = vld [vmem:[#allocation2] sm:$0xf]
        %v684 = vld [vmem:[#allocation2 + $0x4] sm:$0x1]
        %v685 = vld [vmem:[#allocation2 + $0x8] sm:$0xf]
        %v686 = vld [vmem:[#allocation2 + $0xc] sm:$0x1]
        %v687 = vld [vmem:[#allocation2 + $0x10] sm:$0xf]
        %v688 = vld [vmem:[#allocation2 + $0x14] sm:$0x1]
        %v689 = vld [vmem:[#allocation2 + $0x18] sm:$0xf]
        %v690 = vld [vmem:[#allocation2 + $0x1c] sm:$0x1]
        %v691 = vld [vmem:[#allocation2 + $0x20] sm:$0xf]
        %v692 = vld [vmem:[#allocation2 + $0x24] sm:$0x1]
        %v693 = vld [vmem:[#allocation2 + $0x28] sm:$0xf]
        %v694 = vld [vmem:[#allocation2 + $0x2c] sm:$0x1]
        %v695 = vld [vmem:[#allocation2 + $0x30] sm:$0xf]
        %v696 = vld [vmem:[#allocation2 + $0x34] sm:$0x1]
        %v697 = vld [vmem:[#allocation2 + $0x38] sm:$0xf]
        %v698 = vld [vmem:[#allocation2 + $0x3c] sm:$0x1]
        %v699 = vld [vmem:[#allocation2 + $0x40] sm:$0xf]
        %v700 = vld [vmem:[#allocation2 + $0x44] sm:$0x1]
        %v701 = vld [vmem:[#allocation2 + $0x48] sm:$0xf]
        %v702 = vld [vmem:[#allocation2 + $0x4c] sm:$0x1]
        %v703 = vld [vmem:[#allocation2 + $0x50] sm:$0xf]
        %v704 = vld [vmem:[#allocation2 + $0x54] sm:$0x1]
        %v705 = vld [vmem:[#allocation2 + $0x58] sm:$0xf]
        %v706 = vld [vmem:[#allocation2 + $0x5c] sm:$0x1]
        %v707 = vld [vmem:[#allocation2 + $0x60] sm:$0xf]
        %v708 = vld [vmem:[#allocation2 + $0x64] sm:$0x1]
        %v709 = vld [vmem:[#allocation2 + $0x68] sm:$0xf]
        %v710 = vld [vmem:[#allocation2 + $0x6c] sm:$0x1]
        %v711 = vld [vmem:[#allocation2 + $0x70] sm:$0xf]
        %v712 = vld [vmem:[#allocation2 + $0x74] sm:$0x1]
        %v713 = vld [vmem:[#allocation2 + $0x78] sm:$0xf]
        %v714 = vld [vmem:[#allocation2 + $0x7c] sm:$0x1]
        %v715 = vld [vmem:[#allocation2 + $0x80] sm:$0xf]
        %v716 = vld [vmem:[#allocation2 + $0x84] sm:$0x1]
        %v717 = vld [vmem:[#allocation2 + $0x88] sm:$0xf]
        %v718 = vld [vmem:[#allocation2 + $0x8c] sm:$0x1]
        %v719 = vld [vmem:[#allocation2 + $0x90] sm:$0xf]
        %v720 = vld [vmem:[#allocation2 + $0x94] sm:$0x1]
        %v721 = vld [vmem:[#allocation2 + $0x98] sm:$0xf]
        %v722 = vld [vmem:[#allocation2 + $0x9c] sm:$0x1]
        %v723 = vld [vmem:[#allocation2 + $0xa0] sm:$0xf]
        %v724 = vld [vmem:[#allocation2 + $0xa4] sm:$0x1]
        %v725 = vld [vmem:[#allocation2 + $0xa8] sm:$0xf]
        %v726 = vld [vmem:[#allocation2 + $0xac] sm:$0x1]
        %v727 = vld [vmem:[#allocation2 + $0xb0] sm:$0xf]
        %v728 = vld [vmem:[#allocation2 + $0xb4] sm:$0x1]
        %v729 = vld [vmem:[#allocation2 + $0xb8] sm:$0xf]
        %v730 = vld [vmem:[#allocation2 + $0xbc] sm:$0x1]
        %v731 = vld [vmem:[#allocation2 + $0xc0] sm:$0xf]
        %v732 = vld [vmem:[#allocation2 + $0xc4] sm:$0x1]
        %v733 = vld [vmem:[#allocation2 + $0xc8] sm:$0xf]
        %v734 = vld [vmem:[#allocation2 + $0xcc] sm:$0x1]
        %v735 = vld [vmem:[#allocation2 + $0xd0] sm:$0xf]
        %v736 = vld [vmem:[#allocation2 + $0xd4] sm:$0x1]
        %v737 = vld [vmem:[#allocation2 + $0xd8] sm:$0xf]
        %v738 = vld [vmem:[#allocation2 + $0xdc] sm:$0x1]
        %v739 = vld [vmem:[#allocation2 + $0xe0] sm:$0xf]
        %v740 = vld [vmem:[#allocation2 + $0xe4] sm:$0x1]
        %v741 = vld [vmem:[#allocation2 + $0xe8] sm:$0xf]
        %v742 = vld [vmem:[#allocation2 + $0xec] sm:$0x1]
        %v791 = vunpack.c.l.b16 %v683
        %v792 = vunpack.c.l.b16 %v684
        %v793 = vunpack.c.l.b16 %v685
        %v794 = vunpack.c.l.b16 %v686
        %v795 = vunpack.c.l.b16 %v687
        %v796 = vunpack.c.l.b16 %v688
        %v797 = vunpack.c.l.b16 %v689
        %v798 = vunpack.c.l.b16 %v690
        %v799 = vunpack.c.l.b16 %v691
        %v800 = vunpack.c.l.b16 %v692
        %v801 = vunpack.c.l.b16 %v693
        %v802 = vunpack.c.l.b16 %v694
        %v803 = vunpack.c.l.b16 %v695
        %v804 = vunpack.c.l.b16 %v696
        %v805 = vunpack.c.l.b16 %v697
        %v806 = vunpack.c.l.b16 %v698
        %v807 = vunpack.c.l.b16 %v703
        %v808 = vunpack.c.l.b16 %v704
        %v809 = vunpack.c.l.b16 %v705
        %v810 = vunpack.c.l.b16 %v706
        %v811 = vunpack.c.l.b16 %v707
        %v812 = vunpack.c.l.b16 %v708
        %v813 = vunpack.c.l.b16 %v709
        %v814 = vunpack.c.l.b16 %v710
        %v815 = vunpack.c.l.b16 %v711
        %v816 = vunpack.c.l.b16 %v712
        %v817 = vunpack.c.l.b16 %v713
        %v818 = vunpack.c.l.b16 %v714
        %v819 = vunpack.c.l.b16 %v715
        %v820 = vunpack.c.l.b16 %v716
        %v821 = vunpack.c.l.b16 %v717
        %v822 = vunpack.c.l.b16 %v718
        %v823 = vunpack.c.l.b16 %v723
        %v824 = vunpack.c.l.b16 %v724
        %v825 = vunpack.c.l.b16 %v725
        %v826 = vunpack.c.l.b16 %v726
        %v827 = vunpack.c.l.b16 %v727
        %v828 = vunpack.c.l.b16 %v728
        %v829 = vunpack.c.l.b16 %v729
        %v830 = vunpack.c.l.b16 %v730
        %v831 = vunpack.c.l.b16 %v731
        %v832 = vunpack.c.l.b16 %v732
        %v833 = vunpack.c.l.b16 %v733
        %v834 = vunpack.c.l.b16 %v734
        %v835 = vunpack.c.l.b16 %v735
        %v836 = vunpack.c.l.b16 %v736
        %v837 = vunpack.c.l.b16 %v737
        %v838 = vunpack.c.l.b16 %v738
        %v839 = vpack.c.b16 %v792, %v791
        %v840 = vpack.c.b16 %v794, %v793
        %v841 = vpack.c.b16 %v796, %v795
        %v842 = vpack.c.b16 %v798, %v797
        %v843 = vpack.c.b16 %v800, %v799
        %v844 = vpack.c.b16 %v802, %v801
        %v845 = vpack.c.b16 %v804, %v803
        %v846 = vpack.c.b16 %v806, %v805
        %v847 = vpack.c.b16 %v808, %v807
        %v848 = vpack.c.b16 %v810, %v809
        %v849 = vpack.c.b16 %v812, %v811
        %v850 = vpack.c.b16 %v814, %v813
        %v851 = vpack.c.b16 %v816, %v815
        %v852 = vpack.c.b16 %v818, %v817
        %v853 = vpack.c.b16 %v820, %v819
        %v854 = vpack.c.b16 %v822, %v821
        %v855 = vpack.c.b16 %v824, %v823
        %v856 = vpack.c.b16 %v826, %v825
        %v857 = vpack.c.b16 %v828, %v827
        %v858 = vpack.c.b16 %v830, %v829
        %v859 = vpack.c.b16 %v832, %v831
        %v860 = vpack.c.b16 %v834, %v833
        %v861 = vpack.c.b16 %v836, %v835
        %v862 = vpack.c.b16 %v838, %v837
        %v864 = vshrl.u32 %v839, 16
        %v866 = vshll.u32 %v839, 16
        %v868 = vrot.slane %v866, 1
        %v869 = vor.u32 %v864, %v868
        %v871 = vshrl.u32 %v840, 16
        %v873 = vshll.u32 %v840, 16
        %v875 = vrot.slane %v873, 1
        %v876 = vor.u32 %v871, %v875
        %v878 = vshrl.u32 %v841, 16
        %v880 = vshll.u32 %v841, 16
        %v882 = vrot.slane %v880, 1
        %v883 = vor.u32 %v878, %v882
        %v885 = vshrl.u32 %v842, 16
        %v887 = vshll.u32 %v842, 16
        %v889 = vrot.slane %v887, 1
        %v890 = vor.u32 %v885, %v889
        %v892 = vshrl.u32 %v843, 16
        %v894 = vshll.u32 %v843, 16
        %v896 = vrot.slane %v894, 1
        %v897 = vor.u32 %v892, %v896
        %v899 = vshrl.u32 %v844, 16
        %v901 = vshll.u32 %v844, 16
        %v903 = vrot.slane %v901, 1
        %v904 = vor.u32 %v899, %v903
        %v906 = vshrl.u32 %v845, 16
        %v908 = vshll.u32 %v845, 16
        %v910 = vrot.slane %v908, 1
        %v911 = vor.u32 %v906, %v910
        %v913 = vshrl.u32 %v846, 16
        %v915 = vshll.u32 %v846, 16
        %v917 = vrot.slane %v915, 1
        %v918 = vor.u32 %v913, %v917
        %v920 = vshrl.u32 %v847, 16
        %v922 = vshll.u32 %v847, 16
        %v924 = vrot.slane %v922, 1
        %v925 = vor.u32 %v920, %v924
        %v927 = vshrl.u32 %v848, 16
        %v929 = vshll.u32 %v848, 16
        %v931 = vrot.slane %v929, 1
        %v932 = vor.u32 %v927, %v931
        %v934 = vshrl.u32 %v849, 16
        %v936 = vshll.u32 %v849, 16
        %v938 = vrot.slane %v936, 1
        %v939 = vor.u32 %v934, %v938
        %v941 = vshrl.u32 %v850, 16
        %v943 = vshll.u32 %v850, 16
        %v945 = vrot.slane %v943, 1
        %v946 = vor.u32 %v941, %v945
        %v948 = vshrl.u32 %v851, 16
        %v950 = vshll.u32 %v851, 16
        %v952 = vrot.slane %v950, 1
        %v953 = vor.u32 %v948, %v952
        %v955 = vshrl.u32 %v852, 16
        %v957 = vshll.u32 %v852, 16
        %v959 = vrot.slane %v957, 1
        %v960 = vor.u32 %v955, %v959
        %v962 = vshrl.u32 %v853, 16
        %v964 = vshll.u32 %v853, 16
        %v966 = vrot.slane %v964, 1
        %v967 = vor.u32 %v962, %v966
        %v969 = vshrl.u32 %v854, 16
        %v971 = vshll.u32 %v854, 16
        %v973 = vrot.slane %v971, 1
        %v974 = vor.u32 %v969, %v973
        %v976 = vshrl.u32 %v855, 16
        %v978 = vshll.u32 %v855, 16
        %v980 = vrot.slane %v978, 1
        %v981 = vor.u32 %v976, %v980
        %v983 = vshrl.u32 %v856, 16
        %v985 = vshll.u32 %v856, 16
        %v987 = vrot.slane %v985, 1
        %v988 = vor.u32 %v983, %v987
        %v990 = vshrl.u32 %v857, 16
        %v992 = vshll.u32 %v857, 16
        %v994 = vrot.slane %v992, 1
        %v995 = vor.u32 %v990, %v994
        %v997 = vshrl.u32 %v858, 16
        %v999 = vshll.u32 %v858, 16
        %v1001 = vrot.slane %v999, 1
        %v1002 = vor.u32 %v997, %v1001
        %v1004 = vshrl.u32 %v859, 16
        %v1006 = vshll.u32 %v859, 16
        %v1008 = vrot.slane %v1006, 1
        %v1009 = vor.u32 %v1004, %v1008
        %v1011 = vshrl.u32 %v860, 16
        %v1013 = vshll.u32 %v860, 16
        %v1015 = vrot.slane %v1013, 1
        %v1016 = vor.u32 %v1011, %v1015
        %v1018 = vshrl.u32 %v861, 16
        %v1020 = vshll.u32 %v861, 16
        %v1022 = vrot.slane %v1020, 1
        %v1023 = vor.u32 %v1018, %v1022
        %v1025 = vshrl.u32 %v862, 16
        %v1027 = vshll.u32 %v862, 16
        %v1029 = vrot.slane %v1027, 1
        %v1030 = vor.u32 %v1025, %v1029
        %v1031 = vrot.slane %v839, 1
        %v1032 = vrot.slane %v840, 1
        %v1033 = vrot.slane %v841, 1
        %v1034 = vrot.slane %v842, 1
        %v1035 = vrot.slane %v843, 1
        %v1036 = vrot.slane %v844, 1
        %v1037 = vrot.slane %v845, 1
        %v1038 = vrot.slane %v846, 1
        %v1039 = vrot.slane %v847, 1
        %v1040 = vrot.slane %v848, 1
        %v1041 = vrot.slane %v849, 1
        %v1042 = vrot.slane %v850, 1
        %v1043 = vrot.slane %v851, 1
        %v1044 = vrot.slane %v852, 1
        %v1045 = vrot.slane %v853, 1
        %v1046 = vrot.slane %v854, 1
        %v1047 = vrot.slane %v855, 1
        %v1048 = vrot.slane %v856, 1
        %v1049 = vrot.slane %v857, 1
        %v1050 = vrot.slane %v858, 1
        %v1051 = vrot.slane %v859, 1
        %v1052 = vrot.slane %v860, 1
        %v1053 = vrot.slane %v861, 1
        %v1054 = vrot.slane %v862, 1
        %v1061 = vunpack.c.l.b16 %v699
        %v1062 = vunpack.c.l.b16 %v700
        %v1063 = vunpack.c.l.b16 %v719
        %v1064 = vunpack.c.l.b16 %v720
        %v1065 = vunpack.c.l.b16 %v739
        %v1066 = vunpack.c.l.b16 %v740
        %v1067 = vpack.c.b16 %v1062, %v1061
        %v1068 = vpack.c.b16 %v1064, %v1063
        %v1069 = vpack.c.b16 %v1066, %v1065
        %v1071 = vshrl.u32 %v1067, 16
        %v1073 = vshll.u32 %v1067, 16
        %v1075 = vrot.slane %v1073, 1
        %v1076 = vor.u32 %v1071, %v1075
        %v1078 = vshrl.u32 %v1068, 16
        %v1080 = vshll.u32 %v1068, 16
        %v1082 = vrot.slane %v1080, 1
        %v1083 = vor.u32 %v1078, %v1082
        %v1085 = vshrl.u32 %v1069, 16
        %v1087 = vshll.u32 %v1069, 16
        %v1089 = vrot.slane %v1087, 1
        %v1090 = vor.u32 %v1085, %v1089
        %v1091 = vrot.slane %v1067, 1
        %v1092 = vrot.slane %v1068, 1
        %v1093 = vrot.slane %v1069, 1
        %v1100 = vunpack.c.l.b16 %v701
        %v1101 = vunpack.c.l.b16 %v702
        %v1102 = vunpack.c.l.b16 %v721
        %v1103 = vunpack.c.l.b16 %v722
        %v1104 = vunpack.c.l.b16 %v741
        %v1105 = vunpack.c.l.b16 %v742
        %v1106 = vpack.c.b16 %v1101, %v1100
        %v1107 = vpack.c.b16 %v1103, %v1102
        %v1108 = vpack.c.b16 %v1105, %v1104
        %v1110 = vshrl.u32 %v1106, 16
        %v1112 = vshll.u32 %v1106, 16
        %v1114 = vrot.slane %v1112, 1
        %v1115 = vor.u32 %v1110, %v1114
        %v1117 = vshrl.u32 %v1107, 16
        %v1119 = vshll.u32 %v1107, 16
        %v1121 = vrot.slane %v1119, 1
        %v1122 = vor.u32 %v1117, %v1121
        %v1124 = vshrl.u32 %v1108, 16
        %v1126 = vshll.u32 %v1108, 16
        %v1128 = vrot.slane %v1126, 1
        %v1129 = vor.u32 %v1124, %v1128
        %v1130 = vrot.slane %v1106, 1
        %v1131 = vrot.slane %v1107, 1
        %v1132 = vrot.slane %v1108, 1
        %v1133 = vunpack.c.l.b16 %v869
        %v1134 = vunpack.c.l.b16 %v1031
        %v1135 = vunpack.c.l.b16 %v876
        %v1136 = vunpack.c.l.b16 %v1032
        %v1137 = vunpack.c.l.b16 %v883
        %v1138 = vunpack.c.l.b16 %v1033
        %v1139 = vunpack.c.l.b16 %v890
        %v1140 = vunpack.c.l.b16 %v1034
        %v1141 = vunpack.c.l.b16 %v897
        %v1142 = vunpack.c.l.b16 %v1035
        %v1143 = vunpack.c.l.b16 %v904
        %v1144 = vunpack.c.l.b16 %v1036
        %v1145 = vunpack.c.l.b16 %v911
        %v1146 = vunpack.c.l.b16 %v1037
        %v1147 = vunpack.c.l.b16 %v918
        %v1148 = vunpack.c.l.b16 %v1038
        %v1149 = vunpack.c.l.b16 %v1076
        %v1150 = vunpack.c.l.b16 %v1091
        %v1151 = vunpack.c.l.b16 %v1115
        %v1152 = vunpack.c.l.b16 %v1130
        %v1153 = vunpack.c.l.b16 %v925
        %v1154 = vunpack.c.l.b16 %v1039
        %v1155 = vunpack.c.l.b16 %v932
        %v1156 = vunpack.c.l.b16 %v1040
        %v1157 = vunpack.c.l.b16 %v939
        %v1158 = vunpack.c.l.b16 %v1041
        %v1159 = vunpack.c.l.b16 %v946
        %v1160 = vunpack.c.l.b16 %v1042
        %v1161 = vunpack.c.l.b16 %v953
        %v1162 = vunpack.c.l.b16 %v1043
        %v1163 = vunpack.c.l.b16 %v960
        %v1164 = vunpack.c.l.b16 %v1044
        %v1165 = vunpack.c.l.b16 %v967
        %v1166 = vunpack.c.l.b16 %v1045
        %v1167 = vunpack.c.l.b16 %v974
        %v1168 = vunpack.c.l.b16 %v1046
        %v1169 = vunpack.c.l.b16 %v1083
        %v1170 = vunpack.c.l.b16 %v1092
        %v1171 = vunpack.c.l.b16 %v1122
        %v1172 = vunpack.c.l.b16 %v1131
        %v1173 = vunpack.c.l.b16 %v981
        %v1174 = vunpack.c.l.b16 %v1047
        %v1175 = vunpack.c.l.b16 %v988
        %v1176 = vunpack.c.l.b16 %v1048
        %v1177 = vunpack.c.l.b16 %v995
        %v1178 = vunpack.c.l.b16 %v1049
        %v1179 = vunpack.c.l.b16 %v1002
        %v1180 = vunpack.c.l.b16 %v1050
        %v1181 = vunpack.c.l.b16 %v1009
        %v1182 = vunpack.c.l.b16 %v1051
        %v1183 = vunpack.c.l.b16 %v1016
        %v1184 = vunpack.c.l.b16 %v1052
        %v1185 = vunpack.c.l.b16 %v1023
        %v1186 = vunpack.c.l.b16 %v1053
        %v1187 = vunpack.c.l.b16 %v1030
        %v1188 = vunpack.c.l.b16 %v1054
        %v1189 = vunpack.c.l.b16 %v1090
        %v1190 = vunpack.c.l.b16 %v1093
        %v1191 = vunpack.c.l.b16 %v1129
        %v1192 = vunpack.c.l.b16 %v1132
        %v1193 = vld [vmem:[#allocation6] sm:$0xf]
        %v1194 = vld [vmem:[#allocation6 + $0x4] sm:$0xf]
        %v1195 = vld [vmem:[#allocation6 + $0x8] sm:$0xf]
        %v1196 = vld [vmem:[#allocation6 + $0xc] sm:$0xf]
        %v1197 = vld [vmem:[#allocation6 + $0x10] sm:$0xf]
        %v1198 = vld [vmem:[#allocation6 + $0x14] sm:$0xf]
        %v1199 = vld [vmem:[#allocation6 + $0x18] sm:$0xf]
        %v1200 = vld [vmem:[#allocation6 + $0x1c] sm:$0xf]
        %v1201 = vld [vmem:[#allocation6 + $0x20] sm:$0xf]
        %v1202 = vld [vmem:[#allocation6 + $0x24] sm:$0xf]
        %v1203 = vld [vmem:[#allocation6 + $0x28] sm:$0xf]
        %v1204 = vld [vmem:[#allocation6 + $0x2c] sm:$0xf]
        %v1205 = vld [vmem:[#allocation6 + $0x30] sm:$0xf]
        %v1206 = vld [vmem:[#allocation6 + $0x34] sm:$0xf]
        %v1207 = vld [vmem:[#allocation6 + $0x38] sm:$0xf]
        %v1208 = vld [vmem:[#allocation6 + $0x3c] sm:$0xf]
        %v1209 = vld [vmem:[#allocation6 + $0x40] sm:$0xf]
        %v1210 = vld [vmem:[#allocation6 + $0x44] sm:$0xf]
        %v1211 = vld [vmem:[#allocation6 + $0x48] sm:$0xf]
        %v1212 = vld [vmem:[#allocation6 + $0x4c] sm:$0xf]
        %v1213 = vld [vmem:[#allocation6 + $0x50] sm:$0xf]
        %v1214 = vld [vmem:[#allocation6 + $0x54] sm:$0xf]
        %v1215 = vld [vmem:[#allocation6 + $0x58] sm:$0xf]
        %v1216 = vld [vmem:[#allocation6 + $0x5c] sm:$0xf]
        %v1217 = vld [vmem:[#allocation6 + $0x60] sm:$0xf]
        %v1218 = vld [vmem:[#allocation6 + $0x64] sm:$0xf]
        %v1219 = vld [vmem:[#allocation6 + $0x68] sm:$0xf]
        %v1220 = vld [vmem:[#allocation6 + $0x6c] sm:$0xf]
        %v1221 = vld [vmem:[#allocation6 + $0x70] sm:$0xf]
        %v1222 = vld [vmem:[#allocation6 + $0x74] sm:$0xf]
        %v1223 = vld [vmem:[#allocation6 + $0x78] sm:$0xf]
        %v1224 = vld [vmem:[#allocation6 + $0x7c] sm:$0xf]
        %v1225 = vld [vmem:[#allocation6 + $0x80] sm:$0xf]
        %v1226 = vld [vmem:[#allocation6 + $0x84] sm:$0xf]
        %v1227 = vld [vmem:[#allocation6 + $0x88] sm:$0xf]
        %v1228 = vld [vmem:[#allocation6 + $0x8c] sm:$0xf]
        %v1229 = vld [vmem:[#allocation6 + $0x90] sm:$0xf]
        %v1230 = vld [vmem:[#allocation6 + $0x94] sm:$0xf]
        %v1231 = vld [vmem:[#allocation6 + $0x98] sm:$0xf]
        %v1232 = vld [vmem:[#allocation6 + $0x9c] sm:$0xf]
        %v1233 = vld [vmem:[#allocation6 + $0xa0] sm:$0xf]
        %v1234 = vld [vmem:[#allocation6 + $0xa4] sm:$0xf]
        %v1235 = vld [vmem:[#allocation6 + $0xa8] sm:$0xf]
        %v1236 = vld [vmem:[#allocation6 + $0xac] sm:$0xf]
        %v1237 = vld [vmem:[#allocation6 + $0xb0] sm:$0xf]
        %v1238 = vld [vmem:[#allocation6 + $0xb4] sm:$0xf]
        %v1239 = vld [vmem:[#allocation6 + $0xb8] sm:$0xf]
        %v1240 = vld [vmem:[#allocation6 + $0xbc] sm:$0xf]
        %v1241 = vld [vmem:[#allocation6 + $0xc0] sm:$0xf]
        %v1242 = vld [vmem:[#allocation6 + $0xc4] sm:$0xf]
        %v1243 = vld [vmem:[#allocation6 + $0xc8] sm:$0xf]
        %v1244 = vld [vmem:[#allocation6 + $0xcc] sm:$0xf]
        %v1245 = vld [vmem:[#allocation6 + $0xd0] sm:$0xf]
        %v1246 = vld [vmem:[#allocation6 + $0xd4] sm:$0xf]
        %v1247 = vld [vmem:[#allocation6 + $0xd8] sm:$0xf]
        %v1248 = vld [vmem:[#allocation6 + $0xdc] sm:$0xf]
        %v1249 = vld [vmem:[#allocation6 + $0xe0] sm:$0xf]
        %v1250 = vld [vmem:[#allocation6 + $0xe4] sm:$0xf]
        %v1251 = vld [vmem:[#allocation6 + $0xe8] sm:$0xf]
        %v1252 = vld [vmem:[#allocation6 + $0xec] sm:$0xf]
        %v1253 = vld [vmem:[#allocation6 + $0xf0] sm:$0xf]
        %v1254 = vld [vmem:[#allocation6 + $0xf4] sm:$0xf]
        %v1255 = vld [vmem:[#allocation6 + $0xf8] sm:$0xf]
        %v1256 = vld [vmem:[#allocation6 + $0xfc] sm:$0xf]
        %v1257 = vld [vmem:[#allocation6 + $0x100] sm:$0xf]
        %v1258 = vld [vmem:[#allocation6 + $0x104] sm:$0xf]
        %v1259 = vld [vmem:[#allocation6 + $0x108] sm:$0xf]
        %v1260 = vld [vmem:[#allocation6 + $0x10c] sm:$0xf]
        %v1261 = vld [vmem:[#allocation6 + $0x110] sm:$0xf]
        %v1262 = vld [vmem:[#allocation6 + $0x114] sm:$0xf]
        %v1263 = vld [vmem:[#allocation6 + $0x118] sm:$0xf]
        %v1264 = vld [vmem:[#allocation6 + $0x11c] sm:$0xf]
        %v1265 = vld [vmem:[#allocation6 + $0x120] sm:$0xf]
        %v1266 = vld [vmem:[#allocation6 + $0x124] sm:$0xf]
        %v1267 = vld [vmem:[#allocation6 + $0x128] sm:$0xf]
        %v1268 = vld [vmem:[#allocation6 + $0x12c] sm:$0xf]
        %v1269 = vld [vmem:[#allocation6 + $0x130] sm:$0xf]
        %v1270 = vld [vmem:[#allocation6 + $0x134] sm:$0xf]
        %v1271 = vld [vmem:[#allocation6 + $0x138] sm:$0xf]
        %v1272 = vld [vmem:[#allocation6 + $0x13c] sm:$0xf]
        %v1273 = vld [vmem:[#allocation6 + $0x140] sm:$0xf]
        %v1274 = vld [vmem:[#allocation6 + $0x144] sm:$0xf]
        %v1275 = vld [vmem:[#allocation6 + $0x148] sm:$0xf]
        %v1276 = vld [vmem:[#allocation6 + $0x14c] sm:$0xf]
        %v1277 = vld [vmem:[#allocation6 + $0x150] sm:$0xf]
        %v1278 = vld [vmem:[#allocation6 + $0x154] sm:$0xf]
        %v1279 = vld [vmem:[#allocation6 + $0x158] sm:$0xf]
        %v1280 = vld [vmem:[#allocation6 + $0x15c] sm:$0xf]
        %v1281 = vld [vmem:[#allocation6 + $0x160] sm:$0xf]
        %v1282 = vld [vmem:[#allocation6 + $0x164] sm:$0xf]
        %v1283 = vld [vmem:[#allocation6 + $0x168] sm:$0xf]
        %v1284 = vld [vmem:[#allocation6 + $0x16c] sm:$0xf]
        %v1285 = vld [vmem:[#allocation6 + $0x170] sm:$0xf]
        %v1286 = vld [vmem:[#allocation6 + $0x174] sm:$0xf]
        %v1287 = vld [vmem:[#allocation6 + $0x178] sm:$0xf]
        %v1288 = vld [vmem:[#allocation6 + $0x17c] sm:$0xf]
        %v1289 = vld [vmem:[#allocation6 + $0x180] sm:$0xf]
        %v1290 = vld [vmem:[#allocation6 + $0x184] sm:$0xf]
        %v1291 = vld [vmem:[#allocation6 + $0x188] sm:$0xf]
        %v1292 = vld [vmem:[#allocation6 + $0x18c] sm:$0xf]
        %v1293 = vld [vmem:[#allocation6 + $0x190] sm:$0xf]
        %v1294 = vld [vmem:[#allocation6 + $0x194] sm:$0xf]
        %v1295 = vld [vmem:[#allocation6 + $0x198] sm:$0xf]
        %v1296 = vld [vmem:[#allocation6 + $0x19c] sm:$0xf]
        %v1297 = vld [vmem:[#allocation6 + $0x1a0] sm:$0xf]
        %v1298 = vld [vmem:[#allocation6 + $0x1a4] sm:$0xf]
        %v1299 = vld [vmem:[#allocation6 + $0x1a8] sm:$0xf]
        %v1300 = vld [vmem:[#allocation6 + $0x1ac] sm:$0xf]
        %v1301 = vld [vmem:[#allocation6 + $0x1b0] sm:$0xf]
        %v1302 = vld [vmem:[#allocation6 + $0x1b4] sm:$0xf]
        %v1303 = vld [vmem:[#allocation6 + $0x1b8] sm:$0xf]
        %v1304 = vld [vmem:[#allocation6 + $0x1bc] sm:$0xf]
        %v1305 = vld [vmem:[#allocation6 + $0x1c0] sm:$0xf]
        %v1306 = vld [vmem:[#allocation6 + $0x1c4] sm:$0xf]
        %v1307 = vld [vmem:[#allocation6 + $0x1c8] sm:$0xf]
        %v1308 = vld [vmem:[#allocation6 + $0x1cc] sm:$0xf]
        %v1309 = vld [vmem:[#allocation6 + $0x1d0] sm:$0xf]
        %v1310 = vld [vmem:[#allocation6 + $0x1d4] sm:$0xf]
        %v1311 = vld [vmem:[#allocation6 + $0x1d8] sm:$0xf]
        %v1312 = vld [vmem:[#allocation6 + $0x1dc] sm:$0xf]
        %v1313 = vld [vmem:[#allocation6 + $0x1e0] sm:$0xf]
        %v1314 = vld [vmem:[#allocation6 + $0x1e4] sm:$0xf]
        %v1315 = vld [vmem:[#allocation6 + $0x1e8] sm:$0xf]
        %v1316 = vld [vmem:[#allocation6 + $0x1ec] sm:$0xf]
        %v1317 = vld [vmem:[#allocation6 + $0x1f0] sm:$0xf]
        %v1318 = vld [vmem:[#allocation6 + $0x1f4] sm:$0xf]
        %v1319 = vld [vmem:[#allocation6 + $0x1f8] sm:$0xf]
        %v1320 = vld [vmem:[#allocation6 + $0x1fc] sm:$0xf]
        %v1321 = vld [vmem:[#allocation6 + $0x200] sm:$0xf]
        %v1322 = vld [vmem:[#allocation6 + $0x204] sm:$0xf]
        %v1323 = vld [vmem:[#allocation6 + $0x208] sm:$0xf]
        %v1324 = vld [vmem:[#allocation6 + $0x20c] sm:$0xf]
        %v1325 = vld [vmem:[#allocation6 + $0x210] sm:$0xf]
        %v1326 = vld [vmem:[#allocation6 + $0x214] sm:$0xf]
        %v1327 = vld [vmem:[#allocation6 + $0x218] sm:$0xf]
        %v1328 = vld [vmem:[#allocation6 + $0x21c] sm:$0xf]
        %v1329 = vld [vmem:[#allocation6 + $0x220] sm:$0xf]
        %v1330 = vld [vmem:[#allocation6 + $0x224] sm:$0xf]
        %v1331 = vld [vmem:[#allocation6 + $0x228] sm:$0xf]
        %v1332 = vld [vmem:[#allocation6 + $0x22c] sm:$0xf]
        %v1333 = vld [vmem:[#allocation6 + $0x230] sm:$0xf]
        %v1334 = vld [vmem:[#allocation6 + $0x234] sm:$0xf]
        %v1335 = vld [vmem:[#allocation6 + $0x238] sm:$0xf]
        %v1336 = vld [vmem:[#allocation6 + $0x23c] sm:$0xf]
        %v1337 = vld [vmem:[%s2] sm:$0x1]
        %v1339 = vlaneseq
        %v1340 = vshrl.u32 %v1339, 7
        %v1341 = vsub.s32 0, %v1340
        %v1342 = vrot.slane %v1337, %v1341
        %v1344 = vpack.c.b16 %v793, %v791
        %v1345 = vpack.c.b16 %v1135, %v1133
        %v1346 = vpack.c.b16 %v1136, %v1134
        %v1347 = vpack.c.b16 %v795, %v793
        %v1348 = vpack.c.b16 %v1137, %v1135
        %v1349 = vpack.c.b16 %v1138, %v1136
        %v1350 = vpack.c.b16 %v797, %v795
        %v1351 = vpack.c.b16 %v1139, %v1137
        %v1352 = vpack.c.b16 %v1140, %v1138
        %v1353 = vpack.c.b16 %v799, %v797
        %v1354 = vpack.c.b16 %v1141, %v1139
        %v1355 = vpack.c.b16 %v1142, %v1140
        %v1356 = vpack.c.b16 %v801, %v799
        %v1357 = vpack.c.b16 %v1143, %v1141
        %v1358 = vpack.c.b16 %v1144, %v1142
        %v1359 = vpack.c.b16 %v803, %v801
        %v1360 = vpack.c.b16 %v1145, %v1143
        %v1361 = vpack.c.b16 %v1146, %v1144
        %v1362 = vpack.c.b16 %v805, %v803
        %v1363 = vpack.c.b16 %v1147, %v1145
        %v1364 = vpack.c.b16 %v1148, %v1146
        %v1365 = vpack.c.b16 %v1061, %v805
        %v1366 = vpack.c.b16 %v1149, %v1147
        %v1367 = vpack.c.b16 %v1150, %v1148
        %v1368 = vpack.c.b16 %v1100, %v1061
        %v1369 = vpack.c.b16 %v1151, %v1149
        %v1370 = vpack.c.b16 %v1152, %v1150
        %v1371 = vpack.c.b16 %v809, %v807
        %v1372 = vpack.c.b16 %v1155, %v1153
        %v1373 = vpack.c.b16 %v1156, %v1154
        %v1374 = vpack.c.b16 %v811, %v809
        %v1375 = vpack.c.b16 %v1157, %v1155
        %v1376 = vpack.c.b16 %v1158, %v1156
        %v1377 = vpack.c.b16 %v813, %v811
        %v1378 = vpack.c.b16 %v1159, %v1157
        %v1379 = vpack.c.b16 %v1160, %v1158
        %v1380 = vpack.c.b16 %v815, %v813
        %v1381 = vpack.c.b16 %v1161, %v1159
        %v1382 = vpack.c.b16 %v1162, %v1160
        %v1383 = vpack.c.b16 %v817, %v815
        %v1384 = vpack.c.b16 %v1163, %v1161
        %v1385 = vpack.c.b16 %v1164, %v1162
        %v1386 = vpack.c.b16 %v819, %v817
        %v1387 = vpack.c.b16 %v1165, %v1163
        %v1388 = vpack.c.b16 %v1166, %v1164
        %v1389 = vpack.c.b16 %v821, %v819
        %v1390 = vpack.c.b16 %v1167, %v1165
        %v1391 = vpack.c.b16 %v1168, %v1166
        %v1392 = vpack.c.b16 %v1063, %v821
        %v1393 = vpack.c.b16 %v1169, %v1167
        %v1394 = vpack.c.b16 %v1170, %v1168
        %v1395 = vpack.c.b16 %v1102, %v1063
        %v1396 = vpack.c.b16 %v1171, %v1169
        %v1397 = vpack.c.b16 %v1172, %v1170
        %v1398 = vpack.c.b16 %v825, %v823
        %v1399 = vpack.c.b16 %v1175, %v1173
        %v1400 = vpack.c.b16 %v1176, %v1174
        %v1401 = vpack.c.b16 %v827, %v825
        %v1402 = vpack.c.b16 %v1177, %v1175
        %v1403 = vpack.c.b16 %v1178, %v1176
        %v1404 = vpack.c.b16 %v829, %v827
        %v1405 = vpack.c.b16 %v1179, %v1177
        %v1406 = vpack.c.b16 %v1180, %v1178
        %v1407 = vpack.c.b16 %v831, %v829
        %v1408 = vpack.c.b16 %v1181, %v1179
        %v1409 = vpack.c.b16 %v1182, %v1180
        %v1410 = vpack.c.b16 %v833, %v831
        %v1411 = vpack.c.b16 %v1183, %v1181
        %v1412 = vpack.c.b16 %v1184, %v1182
        %v1413 = vpack.c.b16 %v835, %v833
        %v1414 = vpack.c.b16 %v1185, %v1183
        %v1415 = vpack.c.b16 %v1186, %v1184
        %v1416 = vpack.c.b16 %v837, %v835
        %v1417 = vpack.c.b16 %v1187, %v1185
        %v1418 = vpack.c.b16 %v1188, %v1186
        %v1419 = vpack.c.b16 %v1065, %v837
        %v1420 = vpack.c.b16 %v1189, %v1187
        %v1421 = vpack.c.b16 %v1190, %v1188
        %v1422 = vpack.c.b16 %v1104, %v1065
        %v1423 = vpack.c.b16 %v1191, %v1189
        %v1424 = vpack.c.b16 %v1192, %v1190
        %v1650 = vunpack.c.l.b16 %v1193
        %v1651 = vunpack.c.l.b16 %v1194
        %v1652 = vunpack.c.l.b16 %v1195
        %v1653 = vunpack.c.l.b16 %v1196
        %v1654 = vunpack.c.l.b16 %v1197
        %v1655 = vunpack.c.l.b16 %v1198
        %v1656 = vunpack.c.l.b16 %v1199
        %v1657 = vunpack.c.l.b16 %v1200
        %v1658 = vunpack.c.l.b16 %v1201
        %v1659 = vunpack.c.l.b16 %v1202
        %v1660 = vunpack.c.l.b16 %v1203
        %v1661 = vunpack.c.l.b16 %v1204
        %v1662 = vunpack.c.l.b16 %v1205
        %v1663 = vunpack.c.l.b16 %v1206
        %v1664 = vunpack.c.l.b16 %v1207
        %v1665 = vunpack.c.l.b16 %v1208
        %v1666 = vunpack.c.l.b16 %v1209
        %v1667 = vunpack.c.l.b16 %v1210
        %v1668 = vunpack.c.l.b16 %v1211
        %v1669 = vunpack.c.l.b16 %v1212
        %v1670 = vunpack.c.l.b16 %v1213
        %v1671 = vunpack.c.l.b16 %v1214
        %v1672 = vunpack.c.l.b16 %v1215
        %v1673 = vunpack.c.l.b16 %v1216
        %v1674 = vunpack.c.l.b16 %v1217
        %v1675 = vunpack.c.l.b16 %v1218
        %v1676 = vunpack.c.l.b16 %v1219
        %v1677 = vunpack.c.l.b16 %v1220
        %v1678 = vunpack.c.l.b16 %v1221
        %v1679 = vunpack.c.l.b16 %v1222
        %v1680 = vunpack.c.l.b16 %v1223
        %v1681 = vunpack.c.l.b16 %v1224
        %v1682 = vunpack.c.l.b16 %v1225
        %v1683 = vunpack.c.l.b16 %v1226
        %v1684 = vunpack.c.l.b16 %v1227
        %v1685 = vunpack.c.l.b16 %v1228
        %v1686 = vunpack.c.l.b16 %v1229
        %v1687 = vunpack.c.l.b16 %v1230
        %v1688 = vunpack.c.l.b16 %v1231
        %v1689 = vunpack.c.l.b16 %v1232
        %v1690 = vunpack.c.l.b16 %v1233
        %v1691 = vunpack.c.l.b16 %v1234
        %v1692 = vunpack.c.l.b16 %v1235
        %v1693 = vunpack.c.l.b16 %v1236
        %v1694 = vunpack.c.l.b16 %v1237
        %v1695 = vunpack.c.l.b16 %v1238
        %v1696 = vunpack.c.l.b16 %v1239
        %v1697 = vunpack.c.l.b16 %v1240
        %v1698 = vunpack.c.l.b16 %v1241
        %v1699 = vunpack.c.l.b16 %v1242
        %v1700 = vunpack.c.l.b16 %v1243
        %v1701 = vunpack.c.l.b16 %v1244
        %v1702 = vunpack.c.l.b16 %v1245
        %v1703 = vunpack.c.l.b16 %v1246
        %v1704 = vunpack.c.l.b16 %v1247
        %v1705 = vunpack.c.l.b16 %v1248
        %v1706 = vunpack.c.l.b16 %v1249
        %v1707 = vunpack.c.l.b16 %v1250
        %v1708 = vunpack.c.l.b16 %v1251
        %v1709 = vunpack.c.l.b16 %v1252
        %v1710 = vunpack.c.l.b16 %v1253
        %v1711 = vunpack.c.l.b16 %v1254
        %v1712 = vunpack.c.l.b16 %v1255
        %v1713 = vunpack.c.l.b16 %v1256
        %v1714 = vunpack.c.l.b16 %v1257
        %v1715 = vunpack.c.l.b16 %v1258
        %v1716 = vunpack.c.l.b16 %v1259
        %v1717 = vunpack.c.l.b16 %v1260
        %v1718 = vunpack.c.l.b16 %v1261
        %v1719 = vunpack.c.l.b16 %v1262
        %v1720 = vunpack.c.l.b16 %v1263
        %v1721 = vunpack.c.l.b16 %v1264
        %v1722 = vunpack.c.l.b16 %v1265
        %v1723 = vunpack.c.l.b16 %v1266
        %v1724 = vunpack.c.l.b16 %v1267
        %v1725 = vunpack.c.l.b16 %v1268
        %v1726 = vunpack.c.l.b16 %v1269
        %v1727 = vunpack.c.l.b16 %v1270
        %v1728 = vunpack.c.l.b16 %v1271
        %v1729 = vunpack.c.l.b16 %v1272
        %v1730 = vunpack.c.l.b16 %v1273
        %v1731 = vunpack.c.l.b16 %v1274
        %v1732 = vunpack.c.l.b16 %v1275
        %v1733 = vunpack.c.l.b16 %v1276
        %v1734 = vunpack.c.l.b16 %v1277
        %v1735 = vunpack.c.l.b16 %v1278
        %v1736 = vunpack.c.l.b16 %v1279
        %v1737 = vunpack.c.l.b16 %v1280
        %v1738 = vunpack.c.l.b16 %v1281
        %v1739 = vunpack.c.l.b16 %v1282
        %v1740 = vunpack.c.l.b16 %v1283
        %v1741 = vunpack.c.l.b16 %v1284
        %v1742 = vunpack.c.l.b16 %v1285
        %v1743 = vunpack.c.l.b16 %v1286
        %v1744 = vunpack.c.l.b16 %v1287
        %v1745 = vunpack.c.l.b16 %v1288
        %v1746 = vunpack.c.l.b16 %v1289
        %v1747 = vunpack.c.l.b16 %v1290
        %v1748 = vunpack.c.l.b16 %v1291
        %v1749 = vunpack.c.l.b16 %v1292
        %v1750 = vunpack.c.l.b16 %v1293
        %v1751 = vunpack.c.l.b16 %v1294
        %v1752 = vunpack.c.l.b16 %v1295
        %v1753 = vunpack.c.l.b16 %v1296
        %v1754 = vunpack.c.l.b16 %v1297
        %v1755 = vunpack.c.l.b16 %v1298
        %v1756 = vunpack.c.l.b16 %v1299
        %v1757 = vunpack.c.l.b16 %v1300
        %v1758 = vunpack.c.l.b16 %v1301
        %v1759 = vunpack.c.l.b16 %v1302
        %v1760 = vunpack.c.l.b16 %v1303
        %v1761 = vunpack.c.l.b16 %v1304
        %v1762 = vunpack.c.l.b16 %v1305
        %v1763 = vunpack.c.l.b16 %v1306
        %v1764 = vunpack.c.l.b16 %v1307
        %v1765 = vunpack.c.l.b16 %v1308
        %v1766 = vunpack.c.l.b16 %v1309
        %v1767 = vunpack.c.l.b16 %v1310
        %v1768 = vunpack.c.l.b16 %v1311
        %v1769 = vunpack.c.l.b16 %v1312
        %v1770 = vunpack.c.l.b16 %v1313
        %v1771 = vunpack.c.l.b16 %v1314
        %v1772 = vunpack.c.l.b16 %v1315
        %v1773 = vunpack.c.l.b16 %v1316
        %v1774 = vunpack.c.l.b16 %v1317
        %v1775 = vunpack.c.l.b16 %v1318
        %v1776 = vunpack.c.l.b16 %v1319
        %v1777 = vunpack.c.l.b16 %v1320
        %v1778 = vunpack.c.l.b16 %v1321
        %v1779 = vunpack.c.l.b16 %v1322
        %v1780 = vunpack.c.l.b16 %v1323
        %v1781 = vunpack.c.l.b16 %v1324
        %v1782 = vunpack.c.l.b16 %v1325
        %v1783 = vunpack.c.l.b16 %v1326
        %v1784 = vunpack.c.l.b16 %v1327
        %v1785 = vunpack.c.l.b16 %v1328
        %v1786 = vunpack.c.l.b16 %v1329
        %v1787 = vunpack.c.l.b16 %v1330
        %v1788 = vunpack.c.l.b16 %v1331
        %v1789 = vunpack.c.l.b16 %v1332
        %v1790 = vunpack.c.l.b16 %v1333
        %v1791 = vunpack.c.l.b16 %v1334
        %v1792 = vunpack.c.l.b16 %v1335
        %v1793 = vunpack.c.l.b16 %v1336
        %v1794 = vpack.c.b16 %v1651, %v1650
        %v1795 = vpack.c.b16 %v1653, %v1652
        %v1796 = vpack.c.b16 %v1655, %v1654
        %v1797 = vpack.c.b16 %v1657, %v1656
        %v1798 = vpack.c.b16 %v1659, %v1658
        %v1799 = vpack.c.b16 %v1661, %v1660
        %v1800 = vpack.c.b16 %v1663, %v1662
        %v1801 = vpack.c.b16 %v1665, %v1664
        %v1802 = vpack.c.b16 %v1667, %v1666
        %v1803 = vpack.c.b16 %v1669, %v1668
        %v1804 = vpack.c.b16 %v1671, %v1670
        %v1805 = vpack.c.b16 %v1673, %v1672
        %v1806 = vpack.c.b16 %v1675, %v1674
        %v1807 = vpack.c.b16 %v1677, %v1676
        %v1808 = vpack.c.b16 %v1679, %v1678
        %v1809 = vpack.c.b16 %v1681, %v1680
        %v1810 = vpack.c.b16 %v1683, %v1682
        %v1811 = vpack.c.b16 %v1685, %v1684
        %v1812 = vpack.c.b16 %v1687, %v1686
        %v1813 = vpack.c.b16 %v1689, %v1688
        %v1814 = vpack.c.b16 %v1691, %v1690
        %v1815 = vpack.c.b16 %v1693, %v1692
        %v1816 = vpack.c.b16 %v1695, %v1694
        %v1817 = vpack.c.b16 %v1697, %v1696
        %v1818 = vpack.c.b16 %v1699, %v1698
        %v1819 = vpack.c.b16 %v1701, %v1700
        %v1820 = vpack.c.b16 %v1703, %v1702
        %v1821 = vpack.c.b16 %v1705, %v1704
        %v1822 = vpack.c.b16 %v1707, %v1706
        %v1823 = vpack.c.b16 %v1709, %v1708
        %v1824 = vpack.c.b16 %v1711, %v1710
        %v1825 = vpack.c.b16 %v1713, %v1712
        %v1826 = vpack.c.b16 %v1715, %v1714
        %v1827 = vpack.c.b16 %v1717, %v1716
        %v1828 = vpack.c.b16 %v1719, %v1718
        %v1829 = vpack.c.b16 %v1721, %v1720
        %v1830 = vpack.c.b16 %v1723, %v1722
        %v1831 = vpack.c.b16 %v1725, %v1724
        %v1832 = vpack.c.b16 %v1727, %v1726
        %v1833 = vpack.c.b16 %v1729, %v1728
        %v1834 = vpack.c.b16 %v1731, %v1730
        %v1835 = vpack.c.b16 %v1733, %v1732
        %v1836 = vpack.c.b16 %v1735, %v1734
        %v1837 = vpack.c.b16 %v1737, %v1736
        %v1838 = vpack.c.b16 %v1739, %v1738
        %v1839 = vpack.c.b16 %v1741, %v1740
        %v1840 = vpack.c.b16 %v1743, %v1742
        %v1841 = vpack.c.b16 %v1745, %v1744
        %v1842 = vpack.c.b16 %v1747, %v1746
        %v1843 = vpack.c.b16 %v1749, %v1748
        %v1844 = vpack.c.b16 %v1751, %v1750
        %v1845 = vpack.c.b16 %v1753, %v1752
        %v1846 = vpack.c.b16 %v1755, %v1754
        %v1847 = vpack.c.b16 %v1757, %v1756
        %v1848 = vpack.c.b16 %v1759, %v1758
        %v1849 = vpack.c.b16 %v1761, %v1760
        %v1850 = vpack.c.b16 %v1763, %v1762
        %v1851 = vpack.c.b16 %v1765, %v1764
        %v1852 = vpack.c.b16 %v1767, %v1766
        %v1853 = vpack.c.b16 %v1769, %v1768
        %v1854 = vpack.c.b16 %v1771, %v1770
        %v1855 = vpack.c.b16 %v1773, %v1772
        %v1856 = vpack.c.b16 %v1775, %v1774
        %v1857 = vpack.c.b16 %v1777, %v1776
        %v1858 = vpack.c.b16 %v1779, %v1778
        %v1859 = vpack.c.b16 %v1781, %v1780
        %v1860 = vpack.c.b16 %v1783, %v1782
        %v1861 = vpack.c.b16 %v1785, %v1784
        %v1862 = vpack.c.b16 %v1787, %v1786
        %v1863 = vpack.c.b16 %v1789, %v1788
        %v1864 = vpack.c.b16 %v1791, %v1790
        %v1865 = vpack.c.b16 %v1793, %v1792
        %1938 = vmatprep.subr.bf16.mxu0 0
        %1939 = vmatpush1.bf16.msra.mxu0 %v1801
        %1940 = vmatprep.subr.bf16.mxu0 0
        %1941 = vmatpush1.bf16.msra.mxu0 %v1800
        %1942 = vmatprep.subr.bf16.mxu0 0
        %1943 = vmatpush1.bf16.msra.mxu0 %v1799
        %1944 = vmatprep.subr.bf16.mxu0 0
        %1945 = vmatpush1.bf16.msra.mxu0 %v1798
        %1946 = vmatprep.subr.bf16.mxu0 0
        %1947 = vmatpush1.bf16.msra.mxu0 %v1797
        %1948 = vmatprep.subr.bf16.mxu0 0
        %1949 = vmatpush1.bf16.msra.mxu0 %v1796
        %1950 = vmatprep.subr.bf16.mxu0 0
        %1951 = vmatpush1.bf16.msra.mxu0 %v1795
        %1952 = vmatprep.subr.bf16.mxu0 0
        %1953 = vmatpush1.bf16.msra.mxu0 %v1794
        %1954 = vmatprep.subr.bf16.mxu0 0
        %1955 = vmatpush2.bf16.msra.mxu0 %v1809
        %1956 = vmatprep.subr.bf16.mxu0 0
        %1957 = vmatpush2.bf16.msra.mxu0 %v1808
        %1958 = vmatprep.subr.bf16.mxu0 0
        %1959 = vmatpush2.bf16.msra.mxu0 %v1807
        %1960 = vmatprep.subr.bf16.mxu0 0
        %1961 = vmatpush2.bf16.msra.mxu0 %v1806
        %1962 = vmatprep.subr.bf16.mxu0 0
        %1963 = vmatpush2.bf16.msra.mxu0 %v1805
        %1964 = vmatprep.subr.bf16.mxu0 0
        %1965 = vmatpush2.bf16.msra.mxu0 %v1804
        %1966 = vmatprep.subr.bf16.mxu0 0
        %1967 = vmatpush2.bf16.msra.mxu0 %v1803
        %1968 = vmatprep.subr.bf16.mxu0 0
        %1969 = vmatpush2.bf16.msra.mxu0 %v1802
        %1970 = vmatprep.mubr.bf16.mxu0 %v1345
        %1971 = vmatmul.mubr.bf16.gmra.mxu0 %v1344
        %v1972 = vpop.f32.mrf.mxu0
        %v1973 = vadd.f32 %v1342, %v1972
        %v1974 = vpop.f32.mrf.mxu0
        %v1975 = vpop.f32.mrf.mxu0
        %v1976 = vadd.f32 %v1342, %v1975
        %v1977 = vpop.f32.mrf.mxu0
        %1978 = vmatprep.mubr.bf16.mxu0 %v1351
        %1979 = vmatmul.mubr.bf16.gmra.mxu0 %v1350
        %v1980 = vpop.f32.mrf.mxu0
        %v1981 = vadd.f32 %v1342, %v1980
        %v1982 = vpop.f32.mrf.mxu0
        %v1983 = vpop.f32.mrf.mxu0
        %v1984 = vadd.f32 %v1342, %v1983
        %v1985 = vpop.f32.mrf.mxu0
        %1986 = vmatprep.mubr.bf16.mxu0 %v1357
        %1987 = vmatmul.mubr.bf16.gmra.mxu0 %v1356
        %v1988 = vpop.f32.mrf.mxu0
        %v1989 = vadd.f32 %v1342, %v1988
        %v1990 = vpop.f32.mrf.mxu0
        %v1991 = vpop.f32.mrf.mxu0
        %v1992 = vadd.f32 %v1342, %v1991
        %v1993 = vpop.f32.mrf.mxu0
        %1994 = vmatprep.mubr.bf16.mxu0 %v1363
        %1995 = vmatmul.mubr.bf16.gmra.mxu0 %v1362
        %v1996 = vpop.f32.mrf.mxu0
        %v1997 = vadd.f32 %v1342, %v1996
        %v1998 = vpop.f32.mrf.mxu0
        %v1999 = vpop.f32.mrf.mxu0
        %v2000 = vadd.f32 %v1342, %v1999
        %v2001 = vpop.f32.mrf.mxu0
        %2002 = vmatprep.mubr.bf16.mxu0 %v1372
        %2003 = vmatmul.mubr.bf16.gmra.mxu0 %v1371
        %v2004 = vpop.f32.mrf.mxu0
        %v2005 = vadd.f32 %v1342, %v2004
        %v2006 = vpop.f32.mrf.mxu0
        %v2007 = vpop.f32.mrf.mxu0
        %v2008 = vadd.f32 %v1342, %v2007
        %v2009 = vpop.f32.mrf.mxu0
        %2010 = vmatprep.mubr.bf16.mxu0 %v1378
        %2011 = vmatmul.mubr.bf16.gmra.mxu0 %v1377
        %v2012 = vpop.f32.mrf.mxu0
        %v2013 = vadd.f32 %v1342, %v2012
        %v2014 = vpop.f32.mrf.mxu0
        %v2015 = vpop.f32.mrf.mxu0
        %v2016 = vadd.f32 %v1342, %v2015
        %v2017 = vpop.f32.mrf.mxu0
        %2018 = vmatprep.mubr.bf16.mxu0 %v1384
        %2019 = vmatmul.mubr.bf16.gmra.mxu0 %v1383
        %v2020 = vpop.f32.mrf.mxu0
        %v2021 = vadd.f32 %v1342, %v2020
        %v2022 = vpop.f32.mrf.mxu0
        %v2023 = vpop.f32.mrf.mxu0
        %v2024 = vadd.f32 %v1342, %v2023
        %v2025 = vpop.f32.mrf.mxu0
        %2026 = vmatprep.mubr.bf16.mxu0 %v1390
        %2027 = vmatmul.mubr.bf16.gmra.mxu0 %v1389
        %v2028 = vpop.f32.mrf.mxu0
        %v2029 = vadd.f32 %v1342, %v2028
        %v2030 = vpop.f32.mrf.mxu0
        %v2031 = vpop.f32.mrf.mxu0
        %v2032 = vadd.f32 %v1342, %v2031
        %v2033 = vpop.f32.mrf.mxu0
        %2034 = vmatprep.mubr.bf16.mxu0 %v1399
        %2035 = vmatmul.mubr.bf16.gmra.mxu0 %v1398
        %v2036 = vpop.f32.mrf.mxu0
        %v2037 = vadd.f32 %v1342, %v2036
        %v2038 = vpop.f32.mrf.mxu0
        %v2039 = vpop.f32.mrf.mxu0
        %v2040 = vadd.f32 %v1342, %v2039
        %v2041 = vpop.f32.mrf.mxu0
        %2042 = vmatprep.mubr.bf16.mxu0 %v1405
        %2043 = vmatmul.mubr.bf16.gmra.mxu0 %v1404
        %v2044 = vpop.f32.mrf.mxu0
        %v2045 = vadd.f32 %v1342, %v2044
        %v2046 = vpop.f32.mrf.mxu0
        %v2047 = vpop.f32.mrf.mxu0
        %v2048 = vadd.f32 %v1342, %v2047
        %v2049 = vpop.f32.mrf.mxu0
        %2050 = vmatprep.mubr.bf16.mxu0 %v1411
        %2051 = vmatmul.mubr.bf16.gmra.mxu0 %v1410
        %v2052 = vpop.f32.mrf.mxu0
        %v2053 = vadd.f32 %v1342, %v2052
        %v2054 = vpop.f32.mrf.mxu0
        %v2055 = vpop.f32.mrf.mxu0
        %v2056 = vadd.f32 %v1342, %v2055
        %v2057 = vpop.f32.mrf.mxu0
        %2058 = vmatprep.mubr.bf16.mxu0 %v1417
        %2059 = vmatmul.mubr.bf16.gmra.mxu0 %v1416
        %v2060 = vpop.f32.mrf.mxu0
        %v2061 = vadd.f32 %v1342, %v2060
        %v2062 = vpop.f32.mrf.mxu0
        %v2063 = vpop.f32.mrf.mxu0
        %v2064 = vadd.f32 %v1342, %v2063
        %v2065 = vpop.f32.mrf.mxu0
        %2066 = vdwg.mxu0
        %2067 = vmatprep.subr.bf16.mxu0 0
        %2068 = vmatpush1.bf16.msra.mxu0 %v1817
        %2069 = vmatprep.subr.bf16.mxu0 0
        %2070 = vmatpush1.bf16.msra.mxu0 %v1816
        %2071 = vmatprep.subr.bf16.mxu0 0
        %2072 = vmatpush1.bf16.msra.mxu0 %v1815
        %2073 = vmatprep.subr.bf16.mxu0 0
        %2074 = vmatpush1.bf16.msra.mxu0 %v1814
        %2075 = vmatprep.subr.bf16.mxu0 0
        %2076 = vmatpush1.bf16.msra.mxu0 %v1813
        %2077 = vmatprep.subr.bf16.mxu0 0
        %2078 = vmatpush1.bf16.msra.mxu0 %v1812
        %2079 = vmatprep.subr.bf16.mxu0 0
        %2080 = vmatpush1.bf16.msra.mxu0 %v1811
        %2081 = vmatprep.subr.bf16.mxu0 0
        %2082 = vmatpush1.bf16.msra.mxu0 %v1810
        %2083 = vmatprep.subr.bf16.mxu0 0
        %2084 = vmatpush2.bf16.msra.mxu0 %v1825
        %2085 = vmatprep.subr.bf16.mxu0 0
        %2086 = vmatpush2.bf16.msra.mxu0 %v1824
        %2087 = vmatprep.subr.bf16.mxu0 0
        %2088 = vmatpush2.bf16.msra.mxu0 %v1823
        %2089 = vmatprep.subr.bf16.mxu0 0
        %2090 = vmatpush2.bf16.msra.mxu0 %v1822
        %2091 = vmatprep.subr.bf16.mxu0 0
        %2092 = vmatpush2.bf16.msra.mxu0 %v1821
        %2093 = vmatprep.subr.bf16.mxu0 0
        %2094 = vmatpush2.bf16.msra.mxu0 %v1820
        %2095 = vmatprep.subr.bf16.mxu0 0
        %2096 = vmatpush2.bf16.msra.mxu0 %v1819
        %2097 = vmatprep.subr.bf16.mxu0 0
        %2098 = vmatpush2.bf16.msra.mxu0 %v1818
        %2099 = vmatprep.mubr.bf16.mxu0 %v1347
        %2100 = vmatmul.mubr.bf16.gmra.mxu0 %v1346
        %v2101 = vpop.f32.mrf.mxu0
        %v2102 = vadd.f32 %v1973, %v2101
        %v2103 = vpop.f32.mrf.mxu0
        %v2104 = vpop.f32.mrf.mxu0
        %v2105 = vadd.f32 %v1976, %v2104
        %v2106 = vpop.f32.mrf.mxu0
        %2107 = vmatprep.mubr.bf16.mxu0 %v1353
        %2108 = vmatmul.mubr.bf16.gmra.mxu0 %v1352
        %v2109 = vpop.f32.mrf.mxu0
        %v2110 = vadd.f32 %v1981, %v2109
        %v2111 = vpop.f32.mrf.mxu0
        %v2112 = vpop.f32.mrf.mxu0
        %v2113 = vadd.f32 %v1984, %v2112
        %v2114 = vpop.f32.mrf.mxu0
        %2115 = vmatprep.mubr.bf16.mxu0 %v1359
        %2116 = vmatmul.mubr.bf16.gmra.mxu0 %v1358
        %v2117 = vpop.f32.mrf.mxu0
        %v2118 = vadd.f32 %v1989, %v2117
        %v2119 = vpop.f32.mrf.mxu0
        %v2120 = vpop.f32.mrf.mxu0
        %v2121 = vadd.f32 %v1992, %v2120
        %v2122 = vpop.f32.mrf.mxu0
        %2123 = vmatprep.mubr.bf16.mxu0 %v1365
        %2124 = vmatmul.mubr.bf16.gmra.mxu0 %v1364
        %v2125 = vpop.f32.mrf.mxu0
        %v2126 = vadd.f32 %v1997, %v2125
        %v2127 = vpop.f32.mrf.mxu0
        %v2128 = vpop.f32.mrf.mxu0
        %v2129 = vadd.f32 %v2000, %v2128
        %v2130 = vpop.f32.mrf.mxu0
        %2131 = vmatprep.mubr.bf16.mxu0 %v1374
        %2132 = vmatmul.mubr.bf16.gmra.mxu0 %v1373
        %v2133 = vpop.f32.mrf.mxu0
        %v2134 = vadd.f32 %v2005, %v2133
        %v2135 = vpop.f32.mrf.mxu0
        %v2136 = vpop.f32.mrf.mxu0
        %v2137 = vadd.f32 %v2008, %v2136
        %v2138 = vpop.f32.mrf.mxu0
        %2139 = vmatprep.mubr.bf16.mxu0 %v1380
        %2140 = vmatmul.mubr.bf16.gmra.mxu0 %v1379
        %v2141 = vpop.f32.mrf.mxu0
        %v2142 = vadd.f32 %v2013, %v2141
        %v2143 = vpop.f32.mrf.mxu0
        %v2144 = vpop.f32.mrf.mxu0
        %v2145 = vadd.f32 %v2016, %v2144
        %v2146 = vpop.f32.mrf.mxu0
        %2147 = vmatprep.mubr.bf16.mxu0 %v1386
        %2148 = vmatmul.mubr.bf16.gmra.mxu0 %v1385
        %v2149 = vpop.f32.mrf.mxu0
        %v2150 = vadd.f32 %v2021, %v2149
        %v2151 = vpop.f32.mrf.mxu0
        %v2152 = vpop.f32.mrf.mxu0
        %v2153 = vadd.f32 %v2024, %v2152
        %v2154 = vpop.f32.mrf.mxu0
        %2155 = vmatprep.mubr.bf16.mxu0 %v1392
        %2156 = vmatmul.mubr.bf16.gmra.mxu0 %v1391
        %v2157 = vpop.f32.mrf.mxu0
        %v2158 = vadd.f32 %v2029, %v2157
        %v2159 = vpop.f32.mrf.mxu0
        %v2160 = vpop.f32.mrf.mxu0
        %v2161 = vadd.f32 %v2032, %v2160
        %v2162 = vpop.f32.mrf.mxu0
        %2163 = vmatprep.mubr.bf16.mxu0 %v1401
        %2164 = vmatmul.mubr.bf16.gmra.mxu0 %v1400
        %v2165 = vpop.f32.mrf.mxu0
        %v2166 = vadd.f32 %v2037, %v2165
        %v2167 = vpop.f32.mrf.mxu0
        %v2168 = vpop.f32.mrf.mxu0
        %v2169 = vadd.f32 %v2040, %v2168
        %v2170 = vpop.f32.mrf.mxu0
        %2171 = vmatprep.mubr.bf16.mxu0 %v1407
        %2172 = vmatmul.mubr.bf16.gmra.mxu0 %v1406
        %v2173 = vpop.f32.mrf.mxu0
        %v2174 = vadd.f32 %v2045, %v2173
        %v2175 = vpop.f32.mrf.mxu0
        %v2176 = vpop.f32.mrf.mxu0
        %v2177 = vadd.f32 %v2048, %v2176
        %v2178 = vpop.f32.mrf.mxu0
        %2179 = vmatprep.mubr.bf16.mxu0 %v1413
        %2180 = vmatmul.mubr.bf16.gmra.mxu0 %v1412
        %v2181 = vpop.f32.mrf.mxu0
        %v2182 = vadd.f32 %v2053, %v2181
        %v2183 = vpop.f32.mrf.mxu0
        %v2184 = vpop.f32.mrf.mxu0
        %v2185 = vadd.f32 %v2056, %v2184
        %v2186 = vpop.f32.mrf.mxu0
        %2187 = vmatprep.mubr.bf16.mxu0 %v1419
        %2188 = vmatmul.mubr.bf16.gmra.mxu0 %v1418
        %v2189 = vpop.f32.mrf.mxu0
        %v2190 = vadd.f32 %v2061, %v2189
        %v2191 = vpop.f32.mrf.mxu0
        %v2192 = vpop.f32.mrf.mxu0
        %v2193 = vadd.f32 %v2064, %v2192
        %v2194 = vpop.f32.mrf.mxu0
        %2195 = vdwg.mxu0
        %2196 = vmatprep.subr.bf16.mxu0 0
        %2197 = vmatpush1.bf16.msra.mxu0 %v1833
        %2198 = vmatprep.subr.bf16.mxu0 0
        %2199 = vmatpush1.bf16.msra.mxu0 %v1832
        %2200 = vmatprep.subr.bf16.mxu0 0
        %2201 = vmatpush1.bf16.msra.mxu0 %v1831
        %2202 = vmatprep.subr.bf16.mxu0 0
        %2203 = vmatpush1.bf16.msra.mxu0 %v1830
        %2204 = vmatprep.subr.bf16.mxu0 0
        %2205 = vmatpush1.bf16.msra.mxu0 %v1829
        %2206 = vmatprep.subr.bf16.mxu0 0
        %2207 = vmatpush1.bf16.msra.mxu0 %v1828
        %2208 = vmatprep.subr.bf16.mxu0 0
        %2209 = vmatpush1.bf16.msra.mxu0 %v1827
        %2210 = vmatprep.subr.bf16.mxu0 0
        %2211 = vmatpush1.bf16.msra.mxu0 %v1826
        %2212 = vmatprep.subr.bf16.mxu0 0
        %2213 = vmatpush2.bf16.msra.mxu0 %v1841
        %2214 = vmatprep.subr.bf16.mxu0 0
        %2215 = vmatpush2.bf16.msra.mxu0 %v1840
        %2216 = vmatprep.subr.bf16.mxu0 0
        %2217 = vmatpush2.bf16.msra.mxu0 %v1839
        %2218 = vmatprep.subr.bf16.mxu0 0
        %2219 = vmatpush2.bf16.msra.mxu0 %v1838
        %2220 = vmatprep.subr.bf16.mxu0 0
        %2221 = vmatpush2.bf16.msra.mxu0 %v1837
        %2222 = vmatprep.subr.bf16.mxu0 0
        %2223 = vmatpush2.bf16.msra.mxu0 %v1836
        %2224 = vmatprep.subr.bf16.mxu0 0
        %2225 = vmatpush2.bf16.msra.mxu0 %v1835
        %2226 = vmatprep.subr.bf16.mxu0 0
        %2227 = vmatpush2.bf16.msra.mxu0 %v1834
        %2228 = vmatprep.mubr.bf16.mxu0 %v1349
        %2229 = vmatmul.mubr.bf16.gmra.mxu0 %v1348
        %v2230 = vpop.f32.mrf.mxu0
        %v2231 = vadd.f32 %v2102, %v2230
        %v2232 = vpop.f32.mrf.mxu0
        %v2233 = vpop.f32.mrf.mxu0
        %v2234 = vadd.f32 %v2105, %v2233
        %v2235 = vpop.f32.mrf.mxu0
        %2236 = vmatprep.mubr.bf16.mxu0 %v1355
        %2237 = vmatmul.mubr.bf16.gmra.mxu0 %v1354
        %v2238 = vpop.f32.mrf.mxu0
        %v2239 = vadd.f32 %v2110, %v2238
        %v2240 = vpop.f32.mrf.mxu0
        %v2241 = vpop.f32.mrf.mxu0
        %v2242 = vadd.f32 %v2113, %v2241
        %v2243 = vpop.f32.mrf.mxu0
        %2244 = vmatprep.mubr.bf16.mxu0 %v1361
        %2245 = vmatmul.mubr.bf16.gmra.mxu0 %v1360
        %v2246 = vpop.f32.mrf.mxu0
        %v2247 = vadd.f32 %v2118, %v2246
        %v2248 = vpop.f32.mrf.mxu0
        %v2249 = vpop.f32.mrf.mxu0
        %v2250 = vadd.f32 %v2121, %v2249
        %v2251 = vpop.f32.mrf.mxu0
        %2252 = vmatprep.mubr.bf16.mxu0 %v1367
        %2253 = vmatmul.mubr.bf16.gmra.mxu0 %v1366
        %v2254 = vpop.f32.mrf.mxu0
        %v2255 = vadd.f32 %v2126, %v2254
        %v2256 = vpop.f32.mrf.mxu0
        %v2257 = vpop.f32.mrf.mxu0
        %v2258 = vadd.f32 %v2129, %v2257
        %v2259 = vpop.f32.mrf.mxu0
        %2260 = vmatprep.mubr.bf16.mxu0 %v1376
        %2261 = vmatmul.mubr.bf16.gmra.mxu0 %v1375
        %v2262 = vpop.f32.mrf.mxu0
        %v2263 = vadd.f32 %v2134, %v2262
        %v2264 = vpop.f32.mrf.mxu0
        %v2265 = vpop.f32.mrf.mxu0
        %v2266 = vadd.f32 %v2137, %v2265
        %v2267 = vpop.f32.mrf.mxu0
        %2268 = vmatprep.mubr.bf16.mxu0 %v1382
        %2269 = vmatmul.mubr.bf16.gmra.mxu0 %v1381
        %v2270 = vpop.f32.mrf.mxu0
        %v2271 = vadd.f32 %v2142, %v2270
        %v2272 = vpop.f32.mrf.mxu0
        %v2273 = vpop.f32.mrf.mxu0
        %v2274 = vadd.f32 %v2145, %v2273
        %v2275 = vpop.f32.mrf.mxu0
        %2276 = vmatprep.mubr.bf16.mxu0 %v1388
        %2277 = vmatmul.mubr.bf16.gmra.mxu0 %v1387
        %v2278 = vpop.f32.mrf.mxu0
        %v2279 = vadd.f32 %v2150, %v2278
        %v2280 = vpop.f32.mrf.mxu0
        %v2281 = vpop.f32.mrf.mxu0
        %v2282 = vadd.f32 %v2153, %v2281
        %v2283 = vpop.f32.mrf.mxu0
        %2284 = vmatprep.mubr.bf16.mxu0 %v1394
        %2285 = vmatmul.mubr.bf16.gmra.mxu0 %v1393
        %v2286 = vpop.f32.mrf.mxu0
        %v2287 = vadd.f32 %v2158, %v2286
        %v2288 = vpop.f32.mrf.mxu0
        %v2289 = vpop.f32.mrf.mxu0
        %v2290 = vadd.f32 %v2161, %v2289
        %v2291 = vpop.f32.mrf.mxu0
        %2292 = vmatprep.mubr.bf16.mxu0 %v1403
        %2293 = vmatmul.mubr.bf16.gmra.mxu0 %v1402
        %v2294 = vpop.f32.mrf.mxu0
        %v2295 = vadd.f32 %v2166, %v2294
        %v2296 = vpop.f32.mrf.mxu0
        %v2297 = vpop.f32.mrf.mxu0
        %v2298 = vadd.f32 %v2169, %v2297
        %v2299 = vpop.f32.mrf.mxu0
        %2300 = vmatprep.mubr.bf16.mxu0 %v1409
        %2301 = vmatmul.mubr.bf16.gmra.mxu0 %v1408
        %v2302 = vpop.f32.mrf.mxu0
        %v2303 = vadd.f32 %v2174, %v2302
        %v2304 = vpop.f32.mrf.mxu0
        %v2305 = vpop.f32.mrf.mxu0
        %v2306 = vadd.f32 %v2177, %v2305
        %v2307 = vpop.f32.mrf.mxu0
        %2308 = vmatprep.mubr.bf16.mxu0 %v1415
        %2309 = vmatmul.mubr.bf16.gmra.mxu0 %v1414
        %v2310 = vpop.f32.mrf.mxu0
        %v2311 = vadd.f32 %v2182, %v2310
        %v2312 = vpop.f32.mrf.mxu0
        %v2313 = vpop.f32.mrf.mxu0
        %v2314 = vadd.f32 %v2185, %v2313
        %v2315 = vpop.f32.mrf.mxu0
        %2316 = vmatprep.mubr.bf16.mxu0 %v1421
        %2317 = vmatmul.mubr.bf16.gmra.mxu0 %v1420
        %v2318 = vpop.f32.mrf.mxu0
        %v2319 = vadd.f32 %v2190, %v2318
        %v2320 = vpop.f32.mrf.mxu0
        %v2321 = vpop.f32.mrf.mxu0
        %v2322 = vadd.f32 %v2193, %v2321
        %v2323 = vpop.f32.mrf.mxu0
        %2324 = vdwg.mxu0
        %2325 = vmatprep.subr.bf16.mxu0 0
        %2326 = vmatpush1.bf16.msra.mxu0 %v1849
        %2327 = vmatprep.subr.bf16.mxu0 0
        %2328 = vmatpush1.bf16.msra.mxu0 %v1848
        %2329 = vmatprep.subr.bf16.mxu0 0
        %2330 = vmatpush1.bf16.msra.mxu0 %v1847
        %2331 = vmatprep.subr.bf16.mxu0 0
        %2332 = vmatpush1.bf16.msra.mxu0 %v1846
        %2333 = vmatprep.subr.bf16.mxu0 0
        %2334 = vmatpush1.bf16.msra.mxu0 %v1845
        %2335 = vmatprep.subr.bf16.mxu0 0
        %2336 = vmatpush1.bf16.msra.mxu0 %v1844
        %2337 = vmatprep.subr.bf16.mxu0 0
        %2338 = vmatpush1.bf16.msra.mxu0 %v1843
        %2339 = vmatprep.subr.bf16.mxu0 0
        %2340 = vmatpush1.bf16.msra.mxu0 %v1842
        %2341 = vmatprep.subr.bf16.mxu0 0
        %2342 = vmatpush2.bf16.msra.mxu0 %v1857
        %2343 = vmatprep.subr.bf16.mxu0 0
        %2344 = vmatpush2.bf16.msra.mxu0 %v1856
        %2345 = vmatprep.subr.bf16.mxu0 0
        %2346 = vmatpush2.bf16.msra.mxu0 %v1855
        %2347 = vmatprep.subr.bf16.mxu0 0
        %2348 = vmatpush2.bf16.msra.mxu0 %v1854
        %2349 = vmatprep.subr.bf16.mxu0 0
        %2350 = vmatpush2.bf16.msra.mxu0 %v1853
        %2351 = vmatprep.subr.bf16.mxu0 0
        %2352 = vmatpush2.bf16.msra.mxu0 %v1852
        %2353 = vmatprep.subr.bf16.mxu0 0
        %2354 = vmatpush2.bf16.msra.mxu0 %v1851
        %2355 = vmatprep.subr.bf16.mxu0 0
        %2356 = vmatpush2.bf16.msra.mxu0 %v1850
        %2357 = vmatprep.mubr.bf16.mxu0 %v1351
        %2358 = vmatmul.mubr.bf16.gmra.mxu0 %v1350
        %v2359 = vpop.f32.mrf.mxu0
        %v2360 = vadd.f32 %v2231, %v2359
        %v2361 = vpop.f32.mrf.mxu0
        %v2362 = vpop.f32.mrf.mxu0
        %v2363 = vadd.f32 %v2234, %v2362
        %v2364 = vpop.f32.mrf.mxu0
        %2365 = vmatprep.mubr.bf16.mxu0 %v1357
        %2366 = vmatmul.mubr.bf16.gmra.mxu0 %v1356
        %v2367 = vpop.f32.mrf.mxu0
        %v2368 = vadd.f32 %v2239, %v2367
        %v2369 = vpop.f32.mrf.mxu0
        %v2370 = vpop.f32.mrf.mxu0
        %v2371 = vadd.f32 %v2242, %v2370
        %v2372 = vpop.f32.mrf.mxu0
        %2373 = vmatprep.mubr.bf16.mxu0 %v1363
        %2374 = vmatmul.mubr.bf16.gmra.mxu0 %v1362
        %v2375 = vpop.f32.mrf.mxu0
        %v2376 = vadd.f32 %v2247, %v2375
        %v2377 = vpop.f32.mrf.mxu0
        %v2378 = vpop.f32.mrf.mxu0
        %v2379 = vadd.f32 %v2250, %v2378
        %v2380 = vpop.f32.mrf.mxu0
        %2381 = vmatprep.mubr.bf16.mxu0 %v1369
        %2382 = vmatmul.mubr.bf16.gmra.mxu0 %v1368
        %v2383 = vpop.f32.mrf.mxu0
        %v2384 = vadd.f32 %v2255, %v2383
        %v2385 = vpop.f32.mrf.mxu0
        %v2386 = vpop.f32.mrf.mxu0
        %v2387 = vadd.f32 %v2258, %v2386
        %v2388 = vpop.f32.mrf.mxu0
        %2389 = vmatprep.mubr.bf16.mxu0 %v1378
        %2390 = vmatmul.mubr.bf16.gmra.mxu0 %v1377
        %v2391 = vpop.f32.mrf.mxu0
        %v2392 = vadd.f32 %v2263, %v2391
        %v2393 = vpop.f32.mrf.mxu0
        %v2394 = vpop.f32.mrf.mxu0
        %v2395 = vadd.f32 %v2266, %v2394
        %v2396 = vpop.f32.mrf.mxu0
        %2397 = vmatprep.mubr.bf16.mxu0 %v1384
        %2398 = vmatmul.mubr.bf16.gmra.mxu0 %v1383
        %v2399 = vpop.f32.mrf.mxu0
        %v2400 = vadd.f32 %v2271, %v2399
        %v2401 = vpop.f32.mrf.mxu0
        %v2402 = vpop.f32.mrf.mxu0
        %v2403 = vadd.f32 %v2274, %v2402
        %v2404 = vpop.f32.mrf.mxu0
        %2405 = vmatprep.mubr.bf16.mxu0 %v1390
        %2406 = vmatmul.mubr.bf16.gmra.mxu0 %v1389
        %v2407 = vpop.f32.mrf.mxu0
        %v2408 = vadd.f32 %v2279, %v2407
        %v2409 = vpop.f32.mrf.mxu0
        %v2410 = vpop.f32.mrf.mxu0
        %v2411 = vadd.f32 %v2282, %v2410
        %v2412 = vpop.f32.mrf.mxu0
        %2413 = vmatprep.mubr.bf16.mxu0 %v1396
        %2414 = vmatmul.mubr.bf16.gmra.mxu0 %v1395
        %v2415 = vpop.f32.mrf.mxu0
        %v2416 = vadd.f32 %v2287, %v2415
        %v2417 = vpop.f32.mrf.mxu0
        %v2418 = vpop.f32.mrf.mxu0
        %v2419 = vadd.f32 %v2290, %v2418
        %v2420 = vpop.f32.mrf.mxu0
        %2421 = vmatprep.mubr.bf16.mxu0 %v1405
        %2422 = vmatmul.mubr.bf16.gmra.mxu0 %v1404
        %v2423 = vpop.f32.mrf.mxu0
        %v2424 = vadd.f32 %v2295, %v2423
        %v2425 = vpop.f32.mrf.mxu0
        %v2426 = vpop.f32.mrf.mxu0
        %v2427 = vadd.f32 %v2298, %v2426
        %v2428 = vpop.f32.mrf.mxu0
        %2429 = vmatprep.mubr.bf16.mxu0 %v1411
        %2430 = vmatmul.mubr.bf16.gmra.mxu0 %v1410
        %v2431 = vpop.f32.mrf.mxu0
        %v2432 = vadd.f32 %v2303, %v2431
        %v2433 = vpop.f32.mrf.mxu0
        %v2434 = vpop.f32.mrf.mxu0
        %v2435 = vadd.f32 %v2306, %v2434
        %v2436 = vpop.f32.mrf.mxu0
        %2437 = vmatprep.mubr.bf16.mxu0 %v1417
        %2438 = vmatmul.mubr.bf16.gmra.mxu0 %v1416
        %v2439 = vpop.f32.mrf.mxu0
        %v2440 = vadd.f32 %v2311, %v2439
        %v2441 = vpop.f32.mrf.mxu0
        %v2442 = vpop.f32.mrf.mxu0
        %v2443 = vadd.f32 %v2314, %v2442
        %v2444 = vpop.f32.mrf.mxu0
        %2445 = vmatprep.mubr.bf16.mxu0 %v1423
        %2446 = vmatmul.mubr.bf16.gmra.mxu0 %v1422
        %v2447 = vpop.f32.mrf.mxu0
        %v2448 = vadd.f32 %v2319, %v2447
        %v2449 = vpop.f32.mrf.mxu0
        %v2450 = vpop.f32.mrf.mxu0
        %v2451 = vadd.f32 %v2322, %v2450
        %v2452 = vpop.f32.mrf.mxu0
        %2453 = vdwg.mxu0
        %2454 = vmatprep.subr.bf16.mxu0 0
        %2455 = vmatpush1.bf16.msra.mxu0 %v1865
        %2456 = vmatprep.subr.bf16.mxu0 0
        %2457 = vmatpush1.bf16.msra.mxu0 %v1864
        %2458 = vmatprep.subr.bf16.mxu0 0
        %2459 = vmatpush1.bf16.msra.mxu0 %v1863
        %2460 = vmatprep.subr.bf16.mxu0 0
        %2461 = vmatpush1.bf16.msra.mxu0 %v1862
        %2462 = vmatprep.subr.bf16.mxu0 0
        %2463 = vmatpush1.bf16.msra.mxu0 %v1861
        %2464 = vmatprep.subr.bf16.mxu0 0
        %2465 = vmatpush1.bf16.msra.mxu0 %v1860
        %2466 = vmatprep.subr.bf16.mxu0 0
        %2467 = vmatpush1.bf16.msra.mxu0 %v1859
        %2468 = vmatprep.subr.bf16.mxu0 0
        %2469 = vmatpush1.bf16.msra.mxu0 %v1858
        %2470 = vmatprep.subr.bf16.mxu0 0
        %2471 = vmatpush2.bf16.msra.mxu0 0
        %2472 = vmatprep.subr.bf16.mxu0 0
        %2473 = vmatpush2.bf16.msra.mxu0 0
        %2474 = vmatprep.subr.bf16.mxu0 0
        %2475 = vmatpush2.bf16.msra.mxu0 0
        %2476 = vmatprep.subr.bf16.mxu0 0
        %2477 = vmatpush2.bf16.msra.mxu0 0
        %2478 = vmatprep.subr.bf16.mxu0 0
        %2479 = vmatpush2.bf16.msra.mxu0 0
        %2480 = vmatprep.subr.bf16.mxu0 0
        %2481 = vmatpush2.bf16.msra.mxu0 0
        %2482 = vmatprep.subr.bf16.mxu0 0
        %2483 = vmatpush2.bf16.msra.mxu0 0
        %2484 = vmatprep.subr.bf16.mxu0 0
        %2485 = vmatpush2.bf16.msra.mxu0 0
        %2486 = vmatprep.mubr.bf16.mxu0 0
        %2487 = vmatmul.mubr.bf16.gmra.mxu0 %v1352
        %v2488 = vpop.f32.mrf.mxu0
        %v2489 = vadd.f32 %v2360, %v2488
        %v2490 = vpop.f32.mrf.mxu0
        %v2491 = vpop.f32.mrf.mxu0
        %v2492 = vadd.f32 %v2363, %v2491
        %v2493 = vpop.f32.mrf.mxu0
        %2494 = vmatprep.mubr.bf16.mxu0 0
        %2495 = vmatmul.mubr.bf16.gmra.mxu0 %v1358
        %v2496 = vpop.f32.mrf.mxu0
        %v2497 = vadd.f32 %v2368, %v2496
        %v2498 = vpop.f32.mrf.mxu0
        %v2499 = vpop.f32.mrf.mxu0
        %v2500 = vadd.f32 %v2371, %v2499
        %v2501 = vpop.f32.mrf.mxu0
        %2502 = vmatprep.mubr.bf16.mxu0 0
        %2503 = vmatmul.mubr.bf16.gmra.mxu0 %v1364
        %v2504 = vpop.f32.mrf.mxu0
        %v2505 = vadd.f32 %v2376, %v2504
        %v2506 = vpop.f32.mrf.mxu0
        %v2507 = vpop.f32.mrf.mxu0
        %v2508 = vadd.f32 %v2379, %v2507
        %v2509 = vpop.f32.mrf.mxu0
        %2510 = vmatprep.mubr.bf16.mxu0 0
        %2511 = vmatmul.mubr.bf16.gmra.mxu0 %v1370
        %v2512 = vpop.f32.mrf.mxu0
        %v2513 = vadd.f32 %v2384, %v2512
        %v2514 = vpop.f32.mrf.mxu0
        %v2515 = vpop.f32.mrf.mxu0
        %v2516 = vadd.f32 %v2387, %v2515
        %v2517 = vpop.f32.mrf.mxu0
        %2518 = vmatprep.mubr.bf16.mxu0 0
        %2519 = vmatmul.mubr.bf16.gmra.mxu0 %v1379
        %v2520 = vpop.f32.mrf.mxu0
        %v2521 = vadd.f32 %v2392, %v2520
        %v2522 = vpop.f32.mrf.mxu0
        %v2523 = vpop.f32.mrf.mxu0
        %v2524 = vadd.f32 %v2395, %v2523
        %v2525 = vpop.f32.mrf.mxu0
        %2526 = vmatprep.mubr.bf16.mxu0 0
        %2527 = vmatmul.mubr.bf16.gmra.mxu0 %v1385
        %v2528 = vpop.f32.mrf.mxu0
        %v2529 = vadd.f32 %v2400, %v2528
        %v2530 = vpop.f32.mrf.mxu0
        %v2531 = vpop.f32.mrf.mxu0
        %v2532 = vadd.f32 %v2403, %v2531
        %v2533 = vpop.f32.mrf.mxu0
        %2534 = vmatprep.mubr.bf16.mxu0 0
        %2535 = vmatmul.mubr.bf16.gmra.mxu0 %v1391
        %v2536 = vpop.f32.mrf.mxu0
        %v2537 = vadd.f32 %v2408, %v2536
        %v2538 = vpop.f32.mrf.mxu0
        %v2539 = vpop.f32.mrf.mxu0
        %v2540 = vadd.f32 %v2411, %v2539
        %v2541 = vpop.f32.mrf.mxu0
        %2542 = vmatprep.mubr.bf16.mxu0 0
        %2543 = vmatmul.mubr.bf16.gmra.mxu0 %v1397
        %v2544 = vpop.f32.mrf.mxu0
        %v2545 = vadd.f32 %v2416, %v2544
        %v2546 = vpop.f32.mrf.mxu0
        %v2547 = vpop.f32.mrf.mxu0
        %v2548 = vadd.f32 %v2419, %v2547
        %v2549 = vpop.f32.mrf.mxu0
        %2550 = vmatprep.mubr.bf16.mxu0 0
        %2551 = vmatmul.mubr.bf16.gmra.mxu0 %v1406
        %v2552 = vpop.f32.mrf.mxu0
        %v2553 = vadd.f32 %v2424, %v2552
        %v2554 = vpop.f32.mrf.mxu0
        %v2555 = vpop.f32.mrf.mxu0
        %v2556 = vadd.f32 %v2427, %v2555
        %v2557 = vpop.f32.mrf.mxu0
        %2558 = vmatprep.mubr.bf16.mxu0 0
        %2559 = vmatmul.mubr.bf16.gmra.mxu0 %v1412
        %v2560 = vpop.f32.mrf.mxu0
        %v2561 = vadd.f32 %v2432, %v2560
        %v2562 = vpop.f32.mrf.mxu0
        %v2563 = vpop.f32.mrf.mxu0
        %v2564 = vadd.f32 %v2435, %v2563
        %v2565 = vpop.f32.mrf.mxu0
        %2566 = vmatprep.mubr.bf16.mxu0 0
        %2567 = vmatmul.mubr.bf16.gmra.mxu0 %v1418
        %v2568 = vpop.f32.mrf.mxu0
        %v2569 = vadd.f32 %v2440, %v2568
        %v2570 = vpop.f32.mrf.mxu0
        %v2571 = vpop.f32.mrf.mxu0
        %v2572 = vadd.f32 %v2443, %v2571
        %v2573 = vpop.f32.mrf.mxu0
        %2574 = vmatprep.mubr.bf16.mxu0 0
        %2575 = vmatmul.mubr.bf16.gmra.mxu0 %v1424
        %v2576 = vpop.f32.mrf.mxu0
        %v2577 = vadd.f32 %v2448, %v2576
        %v2578 = vpop.f32.mrf.mxu0
        %v2579 = vpop.f32.mrf.mxu0
        %v2580 = vadd.f32 %v2451, %v2579
        %v2581 = vpop.f32.mrf.mxu0
        %2582 = vdwg.mxu0
        %v2583 = vmax.f32 %v2489, 0.0
        %v2584 = vmax.f32 %v2492, 0.0
        %v2585 = vmax.f32 %v2497, 0.0
        %v2586 = vmax.f32 %v2500, 0.0
        %v2587 = vmax.f32 %v2505, 0.0
        %v2588 = vmax.f32 %v2508, 0.0
        %v2589 = vmax.f32 %v2513, 0.0
        %v2590 = vmax.f32 %v2516, 0.0
        %v2591 = vmax.f32 %v2521, 0.0
        %v2592 = vmax.f32 %v2524, 0.0
        %v2593 = vmax.f32 %v2529, 0.0
        %v2594 = vmax.f32 %v2532, 0.0
        %v2595 = vmax.f32 %v2537, 0.0
        %v2596 = vmax.f32 %v2540, 0.0
        %v2597 = vmax.f32 %v2545, 0.0
        %v2598 = vmax.f32 %v2548, 0.0
        %v2599 = vmax.f32 %v2553, 0.0
        %v2600 = vmax.f32 %v2556, 0.0
        %v2601 = vmax.f32 %v2561, 0.0
        %v2602 = vmax.f32 %v2564, 0.0
        %v2603 = vmax.f32 %v2569, 0.0
        %v2604 = vmax.f32 %v2572, 0.0
        %v2605 = vmax.f32 %v2577, 0.0
        %v2606 = vmax.f32 %v2580, 0.0
        %v2607 = vpack.c.bf16 %v2583, %v2583
        %v2608 = vpack.c.bf16 %v2584, %v2584
        %v2609 = vpack.c.bf16 %v2585, %v2585
        %v2610 = vpack.c.bf16 %v2586, %v2586
        %v2611 = vpack.c.bf16 %v2587, %v2587
        %v2612 = vpack.c.bf16 %v2588, %v2588
        %v2613 = vpack.c.bf16 %v2589, %v2589
        %v2614 = vpack.c.bf16 %v2590, %v2590
        %v2615 = vpack.c.bf16 %v2591, %v2591
        %v2616 = vpack.c.bf16 %v2592, %v2592
        %v2617 = vpack.c.bf16 %v2593, %v2593
        %v2618 = vpack.c.bf16 %v2594, %v2594
        %v2619 = vpack.c.bf16 %v2595, %v2595
        %v2620 = vpack.c.bf16 %v2596, %v2596
        %v2621 = vpack.c.bf16 %v2597, %v2597
        %v2622 = vpack.c.bf16 %v2598, %v2598
        %v2623 = vpack.c.bf16 %v2599, %v2599
        %v2624 = vpack.c.bf16 %v2600, %v2600
        %v2625 = vpack.c.bf16 %v2601, %v2601
        %v2626 = vpack.c.bf16 %v2602, %v2602
        %v2627 = vpack.c.bf16 %v2603, %v2603
        %v2628 = vpack.c.bf16 %v2604, %v2604
        %v2629 = vpack.c.bf16 %v2605, %v2605
        %v2630 = vpack.c.bf16 %v2606, %v2606
        %2631 = vst [vmem:[%s204] sm:$0xf] %v2607
        %2632 = vst [vmem:[%s204 + $0x4] sm:$0xf] %v2608
        %2633 = vst [vmem:[%s204 + $0x8] sm:$0xf] %v2609
        %2634 = vst [vmem:[%s204 + $0xc] sm:$0xf] %v2610
        %2635 = vst [vmem:[%s204 + $0x10] sm:$0xf] %v2611
        %2636 = vst [vmem:[%s204 + $0x14] sm:$0xf] %v2612
        %2637 = vst [vmem:[%s204 + $0x18] sm:$0xf] %v2613
        %2638 = vst [vmem:[%s204 + $0x1c] sm:$0xf] %v2614
        %2639 = vst [vmem:[%s204 + $0x20] sm:$0xf] %v2615
        %2640 = vst [vmem:[%s204 + $0x24] sm:$0xf] %v2616
        %2641 = vst [vmem:[%s204 + $0x28] sm:$0xf] %v2617
        %2642 = vst [vmem:[%s204 + $0x2c] sm:$0xf] %v2618
        %2643 = vst [vmem:[%s204 + $0x30] sm:$0xf] %v2619
        %2644 = vst [vmem:[%s204 + $0x34] sm:$0xf] %v2620
        %2645 = vst [vmem:[%s204 + $0x38] sm:$0xf] %v2621
        %2646 = vst [vmem:[%s204 + $0x3c] sm:$0xf] %v2622
        %2647 = vst [vmem:[%s204 + $0x40] sm:$0xf] %v2623
        %2648 = vst [vmem:[%s204 + $0x44] sm:$0xf] %v2624
        %2649 = vst [vmem:[%s204 + $0x48] sm:$0xf] %v2625
        %2650 = vst [vmem:[%s204 + $0x4c] sm:$0xf] %v2626
        %2651 = vst [vmem:[%s204 + $0x50] sm:$0xf] %v2627
        %2652 = vst [vmem:[%s204 + $0x54] sm:$0xf] %v2628
        %2653 = vst [vmem:[%s204 + $0x58] sm:$0xf] %v2629
        %2654 = vst [vmem:[%s204 + $0x5c] sm:$0xf] %v2630
        %s2655 = sand.u32 %s97, 1
        %s2656 = scalar_lea.sflag [#allocation5], %s2655
        %s2657 = sand.u32 %s97, 1
        %s2658 = smul.addr %s2657, 96
        %s2659 = scalar_lea.vmem [#allocation8], %s2658
        // Predicated region
        $region41: #{tpu_custom_call.1} parent=31 // pred_check
          %p2660 = pneg %p107
        $region42: #{tpu_custom_call.1} parent=31 // pred_check_branch
          %2662 = sbr.rel (%p2660) target = $region44
        $region43: #{tpu_custom_call.1} parent=31 // pred_region
          %s2663 = smul.u32 3, %s21
          %s2665 = ssub.s32 1536, 1536
          %2666 = vsyncadd %s2656, %s2665
          %s2667 = smul.addr %s2663, 8
          %s2668 = smul.addr %s2667, 64
          %s2669 = scalar_lea.hbm %s3, %s2668
          %s2670 = sshll.u32 %s2659, 4
          %s2671 = int_to_ptr.vmem [resolvable:$true] %s2670
          %2676 = dma.vmem_to_hbm [thread:$0]  %s2671, 1536, %s2669, %s2656, 64, 64, 4
        $region44: #{tpu_custom_call.1} parent=31 // pred_fallthru
          _
      $region32: #{tpu_custom_call.1} parent=5 // pred_fallthru
        _
      %p2677 = scmp.le.s32.totalorder 2, %s16
      // Predicated region
      $region45: #{tpu_custom_call.1} parent=5 // pred_check
        %p2678 = pneg %p2677
      $region46: #{tpu_custom_call.1} parent=5 // pred_check_branch
        %2680 = sbr.rel (%p2678) target = $region48
      $region47: #{tpu_custom_call.1} parent=5 // pred_region
        %s2681 = ssub.s32 %s16, 2
        // Predicated region
        $region49: #{tpu_custom_call.1} parent=47 // pred_check
          %p2682 = pneg %p113
        $region50: #{tpu_custom_call.1} parent=47 // pred_check_branch
          %2684 = sbr.rel (%p2682) target = $region52
        $region51: #{tpu_custom_call.1} parent=47 // pred_region
          %s2685 = sand.u32 %s98, 1
          %s2686 = scalar_lea.sflag [#allocation5], %s2685
          %s2687 = sand.u32 %s98, 1
          %s2688 = smul.addr %s2687, 96
          %s2689 = scalar_lea.vmem [#allocation8], %s2688
          %2690 = dma.done %s2686, 1536
        $region52: #{tpu_custom_call.1} parent=47 // pred_fallthru
          _
      $region48: #{tpu_custom_call.1} parent=5 // pred_fallthru
        _
    $region6: #{tpu_custom_call.1} parent=1 // loop_footer
      %s20 = sadd.s32 1, %s16
    $region7: #{tpu_custom_call.1} parent=1 // loop_footer_branch
      %15 = sbr.rel target = $region3
    $region8: #{tpu_custom_call.1} parent=1 // loop_exit
      _
    %2691 = vsyncpa [#allocation4], 1
    %s2692 = scalar_lea.sflag [#allocation4], 1
    %2693 = vsyncpa %s2692, 1
    %2694 = vsyncpa [#allocation7], 1
    %2695 = vsyncpa [#allocation5], 1
    %s2696 = scalar_lea.sflag [#allocation5], 1
    %2697 = vsyncpa %s2696, 1

</llo_original>
